<compile_context>
chip_gen: v7x
topology: tpu7x:2x2x1
jax: 0.10.0
libtpu: 0.0.40
codegen_flags: <defaults>
</compile_context>

<pallas_src>
import functools

import numpy as np
import jax
import jax.numpy as jnp
from jax import lax
from jax.experimental import pallas as pl
from jax.experimental.pallas import tpu as pltpu

LANE = 128  # TPU lane width


def _conv_out(n, k, s):
    return (n - k) // s + 1


def _round_up(n, m):
    return ((n + m - 1) // m) * m


# ---------------------------------------------------------------------------
# Host / trace-time constant builders (zero runtime cost).
# ---------------------------------------------------------------------------
def im2col(x_nhwc, kh, kw, stride):
    """conv1 im2col on the raw observation: (N,H,W,C) -> (N, Ho*Wo, kh*kw*C)."""
    n, h, w, c = x_nhwc.shape
    ho, wo = _conv_out(h, kh, stride), _conv_out(w, kw, stride)
    cols = []
    for i in range(kh):
        for j in range(kw):
            cols.append(x_nhwc[:, i:i + stride * ho:stride, j:j + stride * wo:stride, :])
    patches = jnp.concatenate(cols, axis=-1)            # column order = (i, j, c)
    return patches.reshape(n, ho * wo, kh * kw * c), ho, wo


def build_selection(hi, wi, kh, kw, stride, in_rows):
    """Batch-independent stacked 0/1 gather matrix.

    (G @ y)[t*rp + (oh*wo+ow), :] == y[(stride*oh+i)*wi + stride*ow + j, :]
    with t = i*kw + j; each tap's row block is zero-padded to rp (multiple of 8)
    so in-kernel per-tap slices are sublane aligned.
    """
    ho, wo = _conv_out(hi, kh, stride), _conv_out(wi, kw, stride)
    rp = _round_up(ho * wo, 8)
    G = np.zeros((kh * kw * rp, in_rows), np.float32)
    for i in range(kh):
        for j in range(kw):
            t = i * kw + j
            for oh in range(ho):
                for ow in range(wo):
                    G[t * rp + oh * wo + ow,
                      (stride * oh + i) * wi + stride * ow + j] = 1.0
    return jnp.asarray(G, jnp.bfloat16), ho, wo, rp


def conv_gemm(w):                         # (Cout,Cin,KH,KW) -> (KH*KW*Cin, Cout)
    co, ci, kh, kw = w.shape
    return jnp.transpose(w, (2, 3, 1, 0)).reshape(kh * kw * ci, co)


def pack_dense(w_gemm, taps, cin, cout, taps_per_group):
    """Densely packed conv weight (no per-tap 128-row zero padding): tap t occupies
    contraction rows [(t//tpg)*128 + (t%tpg)*cin, ... + cin)."""
    assert taps_per_group * cin <= LANE
    ngroups = -(-taps // taps_per_group)
    out = np.zeros((ngroups * LANE, LANE), np.float32)
    wg = np.asarray(w_gemm, np.float32)
    for t in range(taps):
        g, s = divmod(t, taps_per_group)
        r0 = g * LANE + s * cin
        out[r0:r0 + cin, :cout] = wg[t * cin:(t + 1) * cin, :]
    return jnp.asarray(out, jnp.bfloat16)


def pad_bias(b):
    return jnp.pad(b.astype(jnp.float32).reshape(1, -1), ((0, 0), (0, LANE - b.shape[0])))


def init_params(key, hidden_sizes, num_outputs, viewsize, num_stack=4):
    """Synthetic PyTorch-layout params + folded / densely packed bf16 GEMM params."""
    c1, c2, c3, nh = hidden_sizes
    n_pos = 2 * viewsize * viewsize          # conv-stack output spatial positions
    keys = jax.random.split(key, 10)

    def he(k, shape, fan_in):
        return jax.random.normal(k, shape, jnp.float32) * np.sqrt(2.0 / fan_in)

    torch_params = dict(
        w1=he(keys[0], (c1, num_stack, 8, 8), num_stack * 64),
        b1=jax.random.normal(keys[1], (c1,), jnp.float32) * 0.05,
        w2=he(keys[2], (c2, c1, 4, 4), c1 * 16),
        b2=jax.random.normal(keys[3], (c2,), jnp.float32) * 0.05,
        w3=he(keys[4], (c3, c2, 3, 3), c2 * 9),
        b3=jax.random.normal(keys[5], (c3,), jnp.float32) * 0.05,
        wl1=he(keys[6], (nh, c3 * n_pos), c3 * n_pos),
        bl1=jax.random.normal(keys[7], (nh,), jnp.float32) * 0.05,
        wl2=he(keys[8], (num_outputs, nh), nh),
        bl2=jax.random.normal(keys[9], (num_outputs,), jnp.float32) * 0.05,
    )

    assert max(c1, c2, c3, nh, num_outputs) <= LANE
    assert n_pos * c3 <= LANE                # flatten packs into one 128-lane group

    # linear1: fold PyTorch's NCHW reshape(batch,-1) into the weight rows.  Kernel
    # feature layout: lane index = pos*c3 + ch;  torch layout: ch*n_pos + pos.
    f = np.arange(n_pos * c3)
    perm = (f % c3) * n_pos + (f // c3)
    wl1p = np.zeros((LANE, LANE), np.float32)
    wl1p[:n_pos * c3, :nh] = np.asarray(torch_params['wl1'])[:, perm].T
    wl2p = np.zeros((LANE, LANE), np.float32)
    wl2p[:nh, :num_outputs] = np.asarray(torch_params['wl2']).T

    params = dict(
        # conv1: obs/255 folded into the weight; natural K = 8*8*num_stack.
        w1=jnp.pad(conv_gemm(torch_params['w1']) / 255.0,
                   ((0, 0), (0, LANE - c1))).astype(jnp.bfloat16),
        b1=pad_bias(torch_params['b1']),
        w2=pack_dense(conv_gemm(torch_params['w2']), 16, c1, c2, LANE // c1),
        b2=pad_bias(torch_params['b2']),
        w3=pack_dense(conv_gemm(torch_params['w3']), 9, c2, c3, LANE // c2),
        b3=pad_bias(torch_params['b3']),
        wl1=jnp.asarray(wl1p, jnp.bfloat16),
        bl1=pad_bias(torch_params['bl1']),
        wl2=jnp.asarray(wl2p, jnp.bfloat16),
        bl2=pad_bias(torch_params['bl2']),
    )
    return params, torch_params


# ---------------------------------------------------------------------------
# Fused Pallas kernel: one image per grid step, everything resident in VMEM.
# ---------------------------------------------------------------------------
def _pixelnet_kernel(p1_ref, w1_ref, b1_ref,
                     g2_ref, w2_ref, b2_ref,
                     g3_ref, w3_ref, b3_ref,
                     wl1_ref, bl1_ref, wl2_ref, bl2_ref,
                     out_ref, *,
                     c1, c2, c3, n_pos,
                     taps2, rp2, tpg2, taps3, rp3, tpg3):
    bf16, f32 = jnp.bfloat16, jnp.float32

    def dense(x, w_ref, b_ref, relu=True):
        y = jnp.dot(x, w_ref[...], preferred_element_type=f32) + b_ref[...]
        return jnp.maximum(y, 0.0) if relu else y

    def gather_pack(g_ref, y, taps, rp, cin, tpg):
        # ONE stacked 0/1-selection GEMM (gather on the MXU), then pltpu.roll each
        # tap's row block into its lane slot of a densely packed contraction group
        # (XLU work, overlaps MXU).  The activation's padded channel lanes are
        # exact zeros, so the rolled blocks never collide.
        g = jnp.dot(g_ref[...], y, preferred_element_type=f32)     # (taps*rp, 128)
        groups = []
        for grp in range(-(-taps // tpg)):
            acc = None
            for s in range(tpg):
                t = grp * tpg + s
                if t >= taps:
                    break
                blk = g[t * rp:(t + 1) * rp, :]
                if s:
                    blk = pltpu.roll(blk, s * cin, axis=1)
                acc = blk if acc is None else acc + blk
            groups.append(acc)
        x = groups[0] if len(groups) == 1 else jnp.concatenate(groups, axis=-1)
        return x.astype(bf16)

    y1 = dense(p1_ref[0], w1_ref, b1_ref).astype(bf16)             # conv1 -> (P1, 128)
    x2 = gather_pack(g2_ref, y1, taps2, rp2, c1, tpg2)             # (rp2, 256) dense K
    y2 = dense(x2, w2_ref, b2_ref).astype(bf16)                    # conv2 -> (rp2, 128)
    x3 = gather_pack(g3_ref, y2, taps3, rp3, c2, tpg3)             # (rp3, 384) dense K
    y3 = dense(x3, w3_ref, b3_ref)                                 # conv3 -> (rp3, 128)
    # Flatten: pack the n_pos spatial rows along lanes (the NCHW permutation is
    # folded into wl1 host-side), no matmul needed.
    feat = y3[0:1, :]
    for p in range(1, n_pos):
        feat = feat + pltpu.roll(y3[p:p + 1, :], p * c3, axis=1)
    hid = dense(feat.astype(bf16), wl1_ref, bl1_ref).astype(bf16)  # linear1 -> (1, 128)
    out_ref[0] = dense(hid, wl2_ref, bl2_ref, relu=False)          # linear2 -> (1, 128)


def pixel_network_forward(params, obs, state=None, *, hidden_sizes, num_outputs, viewsize):
    """obs: (batch, 4, H, W) float32 in [0, 255].  Returns (logits, state)."""
    c1, c2, c3, _ = hidden_sizes
    batch = obs.shape[0]
    n_pos = 2 * viewsize * viewsize

    # conv1 im2col in the wrapper: one cheap XLA fusion over the raw observation.
    x = jnp.transpose(obs.astype(jnp.float32), (0, 2, 3, 1))       # NCHW -> NHWC
    p1, h1, w1 = im2col(x, 8, 8, 4)
    p1 = p1.astype(jnp.bfloat16)

    # Batch-independent stacked selection constants (O(1) in batch, ~80 KB bf16).
    g2, h2, w2, rp2 = build_selection(h1, w1, 4, 4, 2, in_rows=h1 * w1)
    g3, h3, w3, rp3 = build_selection(h2, w2, 3, 3, 1, in_rows=rp2)
    assert h3 * w3 == n_pos

    kernel = functools.partial(
        _pixelnet_kernel, c1=c1, c2=c2, c3=c3, n_pos=n_pos,
        taps2=16, rp2=rp2, tpg2=LANE // c1,
        taps3=9, rp3=rp3, tpg3=LANE // c2)

    def whole(arr):                        # full-array block, resident across the grid
        nd = arr.ndim
        return pl.BlockSpec(arr.shape, lambda b, _nd=nd: (0,) * _nd)

    # TODO(synk): for large RL batches, block several images per grid step so the
    # conv GEMMs present M >= 128 (better MXU fill on v6e/v7x).
    logits_pad = pl.pallas_call(
        kernel,
        out_shape=jax.ShapeDtypeStruct((batch, 1, LANE), jnp.float32),
        grid=(batch,),                                   # one image per grid step
        in_specs=[
            pl.BlockSpec((1, h1 * w1, p1.shape[-1]), lambda b: (b, 0, 0)),
            whole(params['w1']), whole(params['b1']),
            whole(g2), whole(params['w2']), whole(params['b2']),
            whole(g3), whole(params['w3']), whole(params['b3']),
            whole(params['wl1']), whole(params['bl1']),
            whole(params['wl2']), whole(params['bl2']),
        ],
        out_specs=pl.BlockSpec((1, 1, LANE), lambda b: (b, 0, 0)),
        compiler_params=pltpu.CompilerParams(
            dimension_semantics=("parallel",),           # v7x: 2 TCs split the batch
            vmem_limit_bytes=32 * 1024 * 1024),          # explicit budget, large headroom
    )(p1, params['w1'], params['b1'],
      g2, params['w2'], params['b2'],
      g3, params['w3'], params['b3'],
      params['wl1'], params['bl1'],
      params['wl2'], params['bl2'])

    # Lane-dense padded output slab; slice the real logits in the wrapper.
    logits = logits_pad.reshape(batch, LANE)[:, :num_outputs]
    return logits, state


# ---------------------------------------------------------------------------
# Pure-JAX reference (mirrors the PyTorch module exactly) for a numerical check.
# ---------------------------------------------------------------------------
def reference_forward(torch_params, obs):
    hp = lax.Precision.HIGHEST

    def conv(x, w, b, stride):
        y = lax.conv_general_dilated(x, w, (stride, stride), 'VALID',
                                     dimension_numbers=('NCHW', 'OIHW', 'NCHW'),
                                     precision=hp)
        return jax.nn.relu(y + b[None, :, None, None])

    x = conv(obs.astype(jnp.float32) / 255.0, torch_params['w1'], torch_params['b1'], 4)
    x = conv(x, torch_params['w2'], torch_params['b2'], 2)
    x = conv(x, torch_params['w3'], torch_params['b3'], 1)
    feat = x.reshape(x.shape[0], -1)                       # NCHW flatten, as in PyTorch
    hid = jax.nn.relu(jnp.dot(feat, torch_params['wl1'].T, precision=hp) + torch_params['bl1'])
    return jnp.dot(hid, torch_params['wl2'].T, precision=hp) + torch_params['bl2']


if __name__ == "__main__":
    hidden_sizes = (16, 32, 32, 64)
    num_outputs = 6
    viewsize = 1                    # conv-stack output spatial = (viewsize, 2*viewsize) = (1, 2)
    batch, H, W = 2, 36, 44         # 36x44 -> conv 8/4 -> 4/2 -> 3/1 -> (1, 2) spatial

    key = jax.random.PRNGKey(0)
    kparam, kx = jax.random.split(key)
    params, torch_params = init_params(kparam, hidden_sizes, num_outputs, viewsize)
    obs = jax.random.uniform(kx, (batch, 4, H, W), jnp.float32, 0.0, 255.0)

    fwd = jax.jit(functools.partial(pixel_network_forward,
                                    hidden_sizes=hidden_sizes,
                                    num_outputs=num_outputs,
                                    viewsize=viewsize))
    logits, state = fwd(params, obs)
    jax.block_until_ready(logits)

    assert logits.shape == (batch, num_outputs), logits.shape
    assert state is None
    assert bool(jnp.all(jnp.isfinite(logits)))

    ref = reference_forward(torch_params, obs)
    max_err = float(jnp.max(jnp.abs(logits - ref)))
    assert max_err < 1e-1, f"mismatch vs f32 reference: {max_err}"

    print("KERNEL_OK")
</pallas_src>

<mosaic_0001>
module attributes {stable_mosaic.version = 11 : i64} {
  func.func @_pixelnet_kernel(%arg0: i32, %arg1: memref<1x80x256xbf16, #tpu.memory_space<vmem>>, %arg2: memref<256x128xbf16, #tpu.memory_space<vmem>>, %arg3: memref<1x128xf32, #tpu.memory_space<vmem>>, %arg4: memref<256x80xbf16, #tpu.memory_space<vmem>>, %arg5: memref<256x128xbf16, #tpu.memory_space<vmem>>, %arg6: memref<1x128xf32, #tpu.memory_space<vmem>>, %arg7: memref<72x16xbf16, #tpu.memory_space<vmem>>, %arg8: memref<384x128xbf16, #tpu.memory_space<vmem>>, %arg9: memref<1x128xf32, #tpu.memory_space<vmem>>, %arg10: memref<128x128xbf16, #tpu.memory_space<vmem>>, %arg11: memref<1x128xf32, #tpu.memory_space<vmem>>, %arg12: memref<128x128xbf16, #tpu.memory_space<vmem>>, %arg13: memref<1x128xf32, #tpu.memory_space<vmem>>, %arg14: memref<1x1x128xf32, #tpu.memory_space<vmem>>) attributes {dimension_semantics = [#tpu.dimension_semantics<parallel>], iteration_bounds = array<i64: 2>, scalar_prefetch = 0 : i64, scratch_operands = 0 : i64, tpu.core_type = #tpu.core_type<tc>, window_params = [{transform_indices = @transform_0, window_bounds = array<i64: 1, 80, 256>}, {pipeline_mode = #tpu.pipeline_mode<synchronous>, transform_indices = @transform_1, window_bounds = array<i64: 256, 128>}, {pipeline_mode = #tpu.pipeline_mode<synchronous>, transform_indices = @transform_2, window_bounds = array<i64: 1, 128>}, {pipeline_mode = #tpu.pipeline_mode<synchronous>, transform_indices = @transform_3, window_bounds = array<i64: 256, 80>}, {pipeline_mode = #tpu.pipeline_mode<synchronous>, transform_indices = @transform_4, window_bounds = array<i64: 256, 128>}, {pipeline_mode = #tpu.pipeline_mode<synchronous>, transform_indices = @transform_5, window_bounds = array<i64: 1, 128>}, {pipeline_mode = #tpu.pipeline_mode<synchronous>, transform_indices = @transform_6, window_bounds = array<i64: 72, 16>}, {pipeline_mode = #tpu.pipeline_mode<synchronous>, transform_indices = @transform_7, window_bounds = array<i64: 384, 128>}, {pipeline_mode = #tpu.pipeline_mode<synchronous>, transform_indices = @transform_8, window_bounds = array<i64: 1, 128>}, {pipeline_mode = #tpu.pipeline_mode<synchronous>, transform_indices = @transform_9, window_bounds = array<i64: 128, 128>}, {pipeline_mode = #tpu.pipeline_mode<synchronous>, transform_indices = @transform_10, window_bounds = array<i64: 1, 128>}, {pipeline_mode = #tpu.pipeline_mode<synchronous>, transform_indices = @transform_11, window_bounds = array<i64: 128, 128>}, {pipeline_mode = #tpu.pipeline_mode<synchronous>, transform_indices = @transform_12, window_bounds = array<i64: 1, 128>}, {transform_indices = @transform_13, window_bounds = array<i64: 1, 1, 128>}]} {
    %c0 = arith.constant 0 : index
    %c0_0 = arith.constant 0 : index
    %c0_1 = arith.constant 0 : index
    %0 = vector.load %arg1[%c0, %c0_0, %c0_1] : memref<1x80x256xbf16, #tpu.memory_space<vmem>>, vector<1x80x256xbf16>
    %1 = vector.shape_cast %0 : vector<1x80x256xbf16> to vector<80x256xbf16>
    %c0_2 = arith.constant 0 : index
    %c0_3 = arith.constant 0 : index
    %2 = vector.load %arg2[%c0_2, %c0_3] : memref<256x128xbf16, #tpu.memory_space<vmem>>, vector<256x128xbf16>
    %cst = arith.constant dense<0.000000e+00> : vector<80x128xf32>
    %3 = tpu.matmul %1, %2, %cst {dimension_numbers = #tpu.dot_dimension_numbers<[1], [0], [0], [1], [0, 0, 1, 1], [], []>} : vector<80x256xbf16>, vector<256x128xbf16>, vector<80x128xf32> -> vector<80x128xf32>
    %c0_4 = arith.constant 0 : index
    %c0_5 = arith.constant 0 : index
    %4 = vector.load %arg3[%c0_4, %c0_5] : memref<1x128xf32, #tpu.memory_space<vmem>>, vector<1x128xf32>
    %5 = vector.broadcast %4 : vector<1x128xf32> to vector<80x128xf32>
    %6 = arith.addf %3, %5 : vector<80x128xf32>
    %cst_6 = arith.constant 0.000000e+00 : f32
    %7 = vector.broadcast %cst_6 : f32 to vector<80x128xf32>
    %8 = arith.maximumf %6, %7 : vector<80x128xf32>
    %9 = arith.truncf %8 : vector<80x128xf32> to vector<80x128xbf16>
    %c0_7 = arith.constant 0 : index
    %c0_8 = arith.constant 0 : index
    %10 = vector.load %arg4[%c0_7, %c0_8] : memref<256x80xbf16, #tpu.memory_space<vmem>>, vector<256x80xbf16>
    %cst_9 = arith.constant dense<0.000000e+00> : vector<256x128xf32>
    %11 = tpu.matmul %10, %9, %cst_9 {dimension_numbers = #tpu.dot_dimension_numbers<[1], [0], [0], [1], [0, 0, 1, 1], [], []>} : vector<256x80xbf16>, vector<80x128xbf16>, vector<256x128xf32> -> vector<256x128xf32>
    %12 = vector.extract_strided_slice %11 {offsets = [0, 0], sizes = [16, 128], strides = [1, 1]} : vector<256x128xf32> to vector<16x128xf32>
    %13 = vector.extract_strided_slice %11 {offsets = [16, 0], sizes = [16, 128], strides = [1, 1]} : vector<256x128xf32> to vector<16x128xf32>
    %c16_i32 = arith.constant 16 : i32
    %14 = tpu.dynamic_rotate %13 by %c16_i32 dim 1 : vector<16x128xf32>, i32 -> vector<16x128xf32>
    %15 = arith.addf %12, %14 : vector<16x128xf32>
    %16 = vector.extract_strided_slice %11 {offsets = [32, 0], sizes = [16, 128], strides = [1, 1]} : vector<256x128xf32> to vector<16x128xf32>
    %c32_i32 = arith.constant 32 : i32
    %17 = tpu.dynamic_rotate %16 by %c32_i32 dim 1 : vector<16x128xf32>, i32 -> vector<16x128xf32>
    %18 = arith.addf %15, %17 : vector<16x128xf32>
    %19 = vector.extract_strided_slice %11 {offsets = [48, 0], sizes = [16, 128], strides = [1, 1]} : vector<256x128xf32> to vector<16x128xf32>
    %c48_i32 = arith.constant 48 : i32
    %20 = tpu.dynamic_rotate %19 by %c48_i32 dim 1 : vector<16x128xf32>, i32 -> vector<16x128xf32>
    %21 = arith.addf %18, %20 : vector<16x128xf32>
    %22 = vector.extract_strided_slice %11 {offsets = [64, 0], sizes = [16, 128], strides = [1, 1]} : vector<256x128xf32> to vector<16x128xf32>
    %c64_i32 = arith.constant 64 : i32
    %23 = tpu.dynamic_rotate %22 by %c64_i32 dim 1 : vector<16x128xf32>, i32 -> vector<16x128xf32>
    %24 = arith.addf %21, %23 : vector<16x128xf32>
    %25 = vector.extract_strided_slice %11 {offsets = [80, 0], sizes = [16, 128], strides = [1, 1]} : vector<256x128xf32> to vector<16x128xf32>
    %c80_i32 = arith.constant 80 : i32
    %26 = tpu.dynamic_rotate %25 by %c80_i32 dim 1 : vector<16x128xf32>, i32 -> vector<16x128xf32>
    %27 = arith.addf %24, %26 : vector<16x128xf32>
    %28 = vector.extract_strided_slice %11 {offsets = [96, 0], sizes = [16, 128], strides = [1, 1]} : vector<256x128xf32> to vector<16x128xf32>
    %c96_i32 = arith.constant 96 : i32
    %29 = tpu.dynamic_rotate %28 by %c96_i32 dim 1 : vector<16x128xf32>, i32 -> vector<16x128xf32>
    %30 = arith.addf %27, %29 : vector<16x128xf32>
    %31 = vector.extract_strided_slice %11 {offsets = [112, 0], sizes = [16, 128], strides = [1, 1]} : vector<256x128xf32> to vector<16x128xf32>
    %c112_i32 = arith.constant 112 : i32
    %32 = tpu.dynamic_rotate %31 by %c112_i32 dim 1 : vector<16x128xf32>, i32 -> vector<16x128xf32>
    %33 = arith.addf %30, %32 : vector<16x128xf32>
    %34 = vector.extract_strided_slice %11 {offsets = [128, 0], sizes = [16, 128], strides = [1, 1]} : vector<256x128xf32> to vector<16x128xf32>
    %35 = vector.extract_strided_slice %11 {offsets = [144, 0], sizes = [16, 128], strides = [1, 1]} : vector<256x128xf32> to vector<16x128xf32>
    %c16_i32_10 = arith.constant 16 : i32
    %36 = tpu.dynamic_rotate %35 by %c16_i32_10 dim 1 : vector<16x128xf32>, i32 -> vector<16x128xf32>
    %37 = arith.addf %34, %36 : vector<16x128xf32>
    %38 = vector.extract_strided_slice %11 {offsets = [160, 0], sizes = [16, 128], strides = [1, 1]} : vector<256x128xf32> to vector<16x128xf32>
    %c32_i32_11 = arith.constant 32 : i32
    %39 = tpu.dynamic_rotate %38 by %c32_i32_11 dim 1 : vector<16x128xf32>, i32 -> vector<16x128xf32>
    %40 = arith.addf %37, %39 : vector<16x128xf32>
    %41 = vector.extract_strided_slice %11 {offsets = [176, 0], sizes = [16, 128], strides = [1, 1]} : vector<256x128xf32> to vector<16x128xf32>
    %c48_i32_12 = arith.constant 48 : i32
    %42 = tpu.dynamic_rotate %41 by %c48_i32_12 dim 1 : vector<16x128xf32>, i32 -> vector<16x128xf32>
    %43 = arith.addf %40, %42 : vector<16x128xf32>
    %44 = vector.extract_strided_slice %11 {offsets = [192, 0], sizes = [16, 128], strides = [1, 1]} : vector<256x128xf32> to vector<16x128xf32>
    %c64_i32_13 = arith.constant 64 : i32
    %45 = tpu.dynamic_rotate %44 by %c64_i32_13 dim 1 : vector<16x128xf32>, i32 -> vector<16x128xf32>
    %46 = arith.addf %43, %45 : vector<16x128xf32>
    %47 = vector.extract_strided_slice %11 {offsets = [208, 0], sizes = [16, 128], strides = [1, 1]} : vector<256x128xf32> to vector<16x128xf32>
    %c80_i32_14 = arith.constant 80 : i32
    %48 = tpu.dynamic_rotate %47 by %c80_i32_14 dim 1 : vector<16x128xf32>, i32 -> vector<16x128xf32>
    %49 = arith.addf %46, %48 : vector<16x128xf32>
    %50 = vector.extract_strided_slice %11 {offsets = [224, 0], sizes = [16, 128], strides = [1, 1]} : vector<256x128xf32> to vector<16x128xf32>
    %c96_i32_15 = arith.constant 96 : i32
    %51 = tpu.dynamic_rotate %50 by %c96_i32_15 dim 1 : vector<16x128xf32>, i32 -> vector<16x128xf32>
    %52 = arith.addf %49, %51 : vector<16x128xf32>
    %53 = vector.extract_strided_slice %11 {offsets = [240, 0], sizes = [16, 128], strides = [1, 1]} : vector<256x128xf32> to vector<16x128xf32>
    %c112_i32_16 = arith.constant 112 : i32
    %54 = tpu.dynamic_rotate %53 by %c112_i32_16 dim 1 : vector<16x128xf32>, i32 -> vector<16x128xf32>
    %55 = arith.addf %52, %54 : vector<16x128xf32>
    %56 = tpu.concatenate %33, %55 in 1 : vector<16x128xf32>, vector<16x128xf32> -> vector<16x256xf32>
    %57 = arith.truncf %56 : vector<16x256xf32> to vector<16x256xbf16>
    %c0_17 = arith.constant 0 : index
    %c0_18 = arith.constant 0 : index
    %58 = vector.load %arg5[%c0_17, %c0_18] : memref<256x128xbf16, #tpu.memory_space<vmem>>, vector<256x128xbf16>
    %cst_19 = arith.constant dense<0.000000e+00> : vector<16x128xf32>
    %59 = tpu.matmul %57, %58, %cst_19 {dimension_numbers = #tpu.dot_dimension_numbers<[1], [0], [0], [1], [0, 0, 1, 1], [], []>} : vector<16x256xbf16>, vector<256x128xbf16>, vector<16x128xf32> -> vector<16x128xf32>
    %c0_20 = arith.constant 0 : index
    %c0_21 = arith.constant 0 : index
    %60 = vector.load %arg6[%c0_20, %c0_21] : memref<1x128xf32, #tpu.memory_space<vmem>>, vector<1x128xf32>
    %61 = vector.broadcast %60 : vector<1x128xf32> to vector<16x128xf32>
    %62 = arith.addf %59, %61 : vector<16x128xf32>
    %cst_22 = arith.constant 0.000000e+00 : f32
    %63 = vector.broadcast %cst_22 : f32 to vector<16x128xf32>
    %64 = arith.maximumf %62, %63 : vector<16x128xf32>
    %65 = arith.truncf %64 : vector<16x128xf32> to vector<16x128xbf16>
    %c0_23 = arith.constant 0 : index
    %c0_24 = arith.constant 0 : index
    %66 = vector.load %arg7[%c0_23, %c0_24] : memref<72x16xbf16, #tpu.memory_space<vmem>>, vector<72x16xbf16>
    %cst_25 = arith.constant dense<0.000000e+00> : vector<72x128xf32>
    %67 = tpu.matmul %66, %65, %cst_25 {dimension_numbers = #tpu.dot_dimension_numbers<[1], [0], [0], [1], [0, 0, 1, 1], [], []>} : vector<72x16xbf16>, vector<16x128xbf16>, vector<72x128xf32> -> vector<72x128xf32>
    %68 = vector.extract_strided_slice %67 {offsets = [0, 0], sizes = [8, 128], strides = [1, 1]} : vector<72x128xf32> to vector<8x128xf32>
    %69 = vector.extract_strided_slice %67 {offsets = [8, 0], sizes = [8, 128], strides = [1, 1]} : vector<72x128xf32> to vector<8x128xf32>
    %c32_i32_26 = arith.constant 32 : i32
    %70 = tpu.dynamic_rotate %69 by %c32_i32_26 dim 1 : vector<8x128xf32>, i32 -> vector<8x128xf32>
    %71 = arith.addf %68, %70 : vector<8x128xf32>
    %72 = vector.extract_strided_slice %67 {offsets = [16, 0], sizes = [8, 128], strides = [1, 1]} : vector<72x128xf32> to vector<8x128xf32>
    %c64_i32_27 = arith.constant 64 : i32
    %73 = tpu.dynamic_rotate %72 by %c64_i32_27 dim 1 : vector<8x128xf32>, i32 -> vector<8x128xf32>
    %74 = arith.addf %71, %73 : vector<8x128xf32>
    %75 = vector.extract_strided_slice %67 {offsets = [24, 0], sizes = [8, 128], strides = [1, 1]} : vector<72x128xf32> to vector<8x128xf32>
    %c96_i32_28 = arith.constant 96 : i32
    %76 = tpu.dynamic_rotate %75 by %c96_i32_28 dim 1 : vector<8x128xf32>, i32 -> vector<8x128xf32>
    %77 = arith.addf %74, %76 : vector<8x128xf32>
    %78 = vector.extract_strided_slice %67 {offsets = [32, 0], sizes = [8, 128], strides = [1, 1]} : vector<72x128xf32> to vector<8x128xf32>
    %79 = vector.extract_strided_slice %67 {offsets = [40, 0], sizes = [8, 128], strides = [1, 1]} : vector<72x128xf32> to vector<8x128xf32>
    %c32_i32_29 = arith.constant 32 : i32
    %80 = tpu.dynamic_rotate %79 by %c32_i32_29 dim 1 : vector<8x128xf32>, i32 -> vector<8x128xf32>
    %81 = arith.addf %78, %80 : vector<8x128xf32>
    %82 = vector.extract_strided_slice %67 {offsets = [48, 0], sizes = [8, 128], strides = [1, 1]} : vector<72x128xf32> to vector<8x128xf32>
    %c64_i32_30 = arith.constant 64 : i32
    %83 = tpu.dynamic_rotate %82 by %c64_i32_30 dim 1 : vector<8x128xf32>, i32 -> vector<8x128xf32>
    %84 = arith.addf %81, %83 : vector<8x128xf32>
    %85 = vector.extract_strided_slice %67 {offsets = [56, 0], sizes = [8, 128], strides = [1, 1]} : vector<72x128xf32> to vector<8x128xf32>
    %c96_i32_31 = arith.constant 96 : i32
    %86 = tpu.dynamic_rotate %85 by %c96_i32_31 dim 1 : vector<8x128xf32>, i32 -> vector<8x128xf32>
    %87 = arith.addf %84, %86 : vector<8x128xf32>
    %88 = vector.extract_strided_slice %67 {offsets = [64, 0], sizes = [8, 128], strides = [1, 1]} : vector<72x128xf32> to vector<8x128xf32>
    %89 = tpu.concatenate %77, %87, %88 in 1 : vector<8x128xf32>, vector<8x128xf32>, vector<8x128xf32> -> vector<8x384xf32>
    %90 = arith.truncf %89 : vector<8x384xf32> to vector<8x384xbf16>
    %c0_32 = arith.constant 0 : index
    %c0_33 = arith.constant 0 : index
    %91 = vector.load %arg8[%c0_32, %c0_33] : memref<384x128xbf16, #tpu.memory_space<vmem>>, vector<384x128xbf16>
    %cst_34 = arith.constant dense<0.000000e+00> : vector<8x128xf32>
    %92 = tpu.matmul %90, %91, %cst_34 {dimension_numbers = #tpu.dot_dimension_numbers<[1], [0], [0], [1], [0, 0, 1, 1], [], []>} : vector<8x384xbf16>, vector<384x128xbf16>, vector<8x128xf32> -> vector<8x128xf32>
    %c0_35 = arith.constant 0 : index
    %c0_36 = arith.constant 0 : index
    %93 = vector.load %arg9[%c0_35, %c0_36] : memref<1x128xf32, #tpu.memory_space<vmem>>, vector<1x128xf32>
    %94 = vector.broadcast %93 : vector<1x128xf32> to vector<8x128xf32>
    %95 = arith.addf %92, %94 : vector<8x128xf32>
    %cst_37 = arith.constant 0.000000e+00 : f32
    %96 = vector.broadcast %cst_37 : f32 to vector<8x128xf32>
    %97 = arith.maximumf %95, %96 : vector<8x128xf32>
    %98 = vector.extract_strided_slice %97 {offsets = [0, 0], sizes = [1, 128], strides = [1, 1]} : vector<8x128xf32> to vector<1x128xf32>
    %99 = vector.extract_strided_slice %97 {offsets = [1, 0], sizes = [1, 128], strides = [1, 1]} : vector<8x128xf32> to vector<1x128xf32>
    %c32_i32_38 = arith.constant 32 : i32
    %100 = tpu.dynamic_rotate %99 by %c32_i32_38 dim 1 : vector<1x128xf32>, i32 -> vector<1x128xf32>
    %101 = arith.addf %98, %100 : vector<1x128xf32>
    %102 = arith.truncf %101 : vector<1x128xf32> to vector<1x128xbf16>
    %c0_39 = arith.constant 0 : index
    %c0_40 = arith.constant 0 : index
    %103 = vector.load %arg10[%c0_39, %c0_40] : memref<128x128xbf16, #tpu.memory_space<vmem>>, vector<128x128xbf16>
    %cst_41 = arith.constant dense<0.000000e+00> : vector<1x128xf32>
    %104 = tpu.matmul %102, %103, %cst_41 {dimension_numbers = #tpu.dot_dimension_numbers<[1], [0], [0], [1], [0, 0, 1, 1], [], []>} : vector<1x128xbf16>, vector<128x128xbf16>, vector<1x128xf32> -> vector<1x128xf32>
    %c0_42 = arith.constant 0 : index
    %c0_43 = arith.constant 0 : index
    %105 = vector.load %arg11[%c0_42, %c0_43] : memref<1x128xf32, #tpu.memory_space<vmem>>, vector<1x128xf32>
    %106 = arith.addf %104, %105 : vector<1x128xf32>
    %cst_44 = arith.constant 0.000000e+00 : f32
    %107 = vector.broadcast %cst_44 : f32 to vector<1x128xf32>
    %108 = arith.maximumf %106, %107 : vector<1x128xf32>
    %109 = arith.truncf %108 : vector<1x128xf32> to vector<1x128xbf16>
    %c0_45 = arith.constant 0 : index
    %c0_46 = arith.constant 0 : index
    %110 = vector.load %arg12[%c0_45, %c0_46] : memref<128x128xbf16, #tpu.memory_space<vmem>>, vector<128x128xbf16>
    %cst_47 = arith.constant dense<0.000000e+00> : vector<1x128xf32>
    %111 = tpu.matmul %109, %110, %cst_47 {dimension_numbers = #tpu.dot_dimension_numbers<[1], [0], [0], [1], [0, 0, 1, 1], [], []>} : vector<1x128xbf16>, vector<128x128xbf16>, vector<1x128xf32> -> vector<1x128xf32>
    %c0_48 = arith.constant 0 : index
    %c0_49 = arith.constant 0 : index
    %112 = vector.load %arg13[%c0_48, %c0_49] : memref<1x128xf32, #tpu.memory_space<vmem>>, vector<1x128xf32>
    %113 = arith.addf %111, %112 : vector<1x128xf32>
    %c0_50 = arith.constant 0 : index
    %c0_51 = arith.constant 0 : index
    %c0_52 = arith.constant 0 : index
    %114 = vector.load %arg14[%c0_50, %c0_51, %c0_52] : memref<1x1x128xf32, #tpu.memory_space<vmem>>, vector<1x1x128xf32>
    %115 = vector.shape_cast %114 : vector<1x1x128xf32> to vector<1x128xf32>
    %116 = vector.shape_cast %113 : vector<1x128xf32> to vector<1x1x128xf32>
    tpu.vector_store %arg14[%c0_50, %c0_51, %c0_52], %116 {strides = array<i32>} : memref<1x1x128xf32, #tpu.memory_space<vmem>>, vector<1x1x128xf32>,
    return
  }
  func.func @transform_0(%arg0: i32) -> (i32, i32, i32) {
    %c0_i32 = arith.constant 0 : i32
    %c0_i32_0 = arith.constant 0 : i32
    %c0_i32_1 = arith.constant 0 : i32
    return %arg0, %c0_i32, %c0_i32_0 : i32, i32, i32
  }
  func.func @transform_1(%arg0: i32) -> (i32, i32) {
    %c0_i32 = arith.constant 0 : i32
    %c0_i32_0 = arith.constant 0 : i32
    %c0_i32_1 = arith.constant 0 : i32
    return %c0_i32, %c0_i32_0 : i32, i32
  }
  func.func @transform_2(%arg0: i32) -> (i32, i32) {
    %c0_i32 = arith.constant 0 : i32
    %c0_i32_0 = arith.constant 0 : i32
    %c0_i32_1 = arith.constant 0 : i32
    return %c0_i32, %c0_i32_0 : i32, i32
  }
  func.func @transform_3(%arg0: i32) -> (i32, i32) {
    %c0_i32 = arith.constant 0 : i32
    %c0_i32_0 = arith.constant 0 : i32
    %c0_i32_1 = arith.constant 0 : i32
    return %c0_i32, %c0_i32_0 : i32, i32
  }
  func.func @transform_4(%arg0: i32) -> (i32, i32) {
    %c0_i32 = arith.constant 0 : i32
    %c0_i32_0 = arith.constant 0 : i32
    %c0_i32_1 = arith.constant 0 : i32
    return %c0_i32, %c0_i32_0 : i32, i32
  }
  func.func @transform_5(%arg0: i32) -> (i32, i32) {
    %c0_i32 = arith.constant 0 : i32
    %c0_i32_0 = arith.constant 0 : i32
    %c0_i32_1 = arith.constant 0 : i32
    return %c0_i32, %c0_i32_0 : i32, i32
  }
  func.func @transform_6(%arg0: i32) -> (i32, i32) {
    %c0_i32 = arith.constant 0 : i32
    %c0_i32_0 = arith.constant 0 : i32
    %c0_i32_1 = arith.constant 0 : i32
    return %c0_i32, %c0_i32_0 : i32, i32
  }
  func.func @transform_7(%arg0: i32) -> (i32, i32) {
    %c0_i32 = arith.constant 0 : i32
    %c0_i32_0 = arith.constant 0 : i32
    %c0_i32_1 = arith.constant 0 : i32
    return %c0_i32, %c0_i32_0 : i32, i32
  }
  func.func @transform_8(%arg0: i32) -> (i32, i32) {
    %c0_i32 = arith.constant 0 : i32
    %c0_i32_0 = arith.constant 0 : i32
    %c0_i32_1 = arith.constant 0 : i32
    return %c0_i32, %c0_i32_0 : i32, i32
  }
  func.func @transform_9(%arg0: i32) -> (i32, i32) {
    %c0_i32 = arith.constant 0 : i32
    %c0_i32_0 = arith.constant 0 : i32
    %c0_i32_1 = arith.constant 0 : i32
    return %c0_i32, %c0_i32_0 : i32, i32
  }
  func.func @transform_10(%arg0: i32) -> (i32, i32) {
    %c0_i32 = arith.constant 0 : i32
    %c0_i32_0 = arith.constant 0 : i32
    %c0_i32_1 = arith.constant 0 : i32
    return %c0_i32, %c0_i32_0 : i32, i32
  }
  func.func @transform_11(%arg0: i32) -> (i32, i32) {
    %c0_i32 = arith.constant 0 : i32
    %c0_i32_0 = arith.constant 0 : i32
    %c0_i32_1 = arith.constant 0 : i32
    return %c0_i32, %c0_i32_0 : i32, i32
  }
  func.func @transform_12(%arg0: i32) -> (i32, i32) {
    %c0_i32 = arith.constant 0 : i32
    %c0_i32_0 = arith.constant 0 : i32
    %c0_i32_1 = arith.constant 0 : i32
    return %c0_i32, %c0_i32_0 : i32, i32
  }
  func.func @transform_13(%arg0: i32) -> (i32, i32, i32) {
    %c0_i32 = arith.constant 0 : i32
    %c0_i32_0 = arith.constant 0 : i32
    %c0_i32_1 = arith.constant 0 : i32
    return %arg0, %c0_i32, %c0_i32_0 : i32, i32, i32
  }
}

</mosaic_0001>

<llo_original>
// kernel: pixel_network_forward.1
$region0: #{pixel_network_forward.1}
  #allocation0 [shape = 'u32[]', space=smem, size = 0x4, offset = 0x4, fixed_abs, tag = 'smem constant byte address 0x4 - core index']
  #allocation1 [shape = 'u32[144,128]{1,0:T(1,128)}', space=vmem, size = 0x12000, scoped, tag = 'internal scratch']
  %s0 = inlined_call_operand.vmem [shape: bf16[2,80,256], index: 0, kind: input, shape index: {}]
  %s1 = inlined_call_operand.vmem [shape: bf16[256,128], index: 1, kind: input, shape index: {}]
  %s2 = inlined_call_operand.vmem [shape: f32[1,128], index: 2, kind: input, shape index: {}]
  %s3 = inlined_call_operand.vmem [shape: bf16[256,80], index: 3, kind: input, shape index: {}]
  %s4 = inlined_call_operand.vmem [shape: bf16[256,128], index: 4, kind: input, shape index: {}]
  %s5 = inlined_call_operand.vmem [shape: f32[1,128], index: 5, kind: input, shape index: {}]
  %s6 = inlined_call_operand.vmem [shape: bf16[72,16], index: 6, kind: input, shape index: {}]
  %s7 = inlined_call_operand.vmem [shape: bf16[384,128], index: 7, kind: input, shape index: {}]
  %s8 = inlined_call_operand.vmem [shape: f32[1,128], index: 8, kind: input, shape index: {}]
  %s9 = inlined_call_operand.vmem [shape: bf16[128,128], index: 9, kind: input, shape index: {}]
  %s10 = inlined_call_operand.vmem [shape: f32[1,128], index: 10, kind: input, shape index: {}]
  %s11 = inlined_call_operand.vmem [shape: bf16[128,128], index: 11, kind: input, shape index: {}]
  %s12 = inlined_call_operand.vmem [shape: f32[1,128], index: 12, kind: input, shape index: {}]
  %s13 = inlined_call_operand.hbm [shape: f32[2,1,128], index: 13, kind: output, shape index: {}]
  %s14 = sld [smem:[#allocation0]]
  $region85: #{pixel_network_forward.1} parent=0
    _
  %s16 = ssub.s32 1, %s14
  %s17 = scalar_select 0, %s16, %s14
  $region1: #{pixel_network_forward.1} parent=0
    #allocation2 [shape = 'u8[1024]{0}', space=vmem, size = 0x400, scoped, tag = 'output window, operand 0']
    #allocation3 [shape = 's32[2]{0}', space=sflag, size = 0x8, scoped, tag = 'scoped memory for pixel_network_forward.1']
    %18 = vsyncpa [#allocation3], 0
    %s19 = scalar_lea.sflag [#allocation3], 1
    %20 = vsyncpa %s19, 0
    loop: start=0, step=1, limit=4
    $region2: #{pixel_network_forward.1} parent=1 // loop_pre_header
      _
    $region3: #{pixel_network_forward.1} parent=1 // loop_header
      %s22 = sphi 0, %s26
      %p23 = scmp.ge.s32.totalorder %s22, 4
      %s32 = sphi 0, %s34
      %s35 = sphi 0, %s32
      %s36 = sphi 0, %s35
      %s52 = sphi 0, %s36
      %s56 = sphi 0, %s56
      %s58 = sphi 0, %s56
      %s59 = sphi 0, %s58
      %s73 = sphi 0, %s59
      %s77 = sphi 0, %s77
      %s79 = sphi 0, %s77
      %s80 = sphi 0, %s79
      %s94 = sphi 0, %s80
      %s98 = sphi 0, %s98
      %s100 = sphi 0, %s98
      %s101 = sphi 0, %s100
      %s115 = sphi 0, %s101
      %s119 = sphi 0, %s119
      %s121 = sphi 0, %s119
      %s122 = sphi 0, %s121
      %s136 = sphi 0, %s122
      %s140 = sphi 0, %s140
      %s142 = sphi 0, %s140
      %s143 = sphi 0, %s142
      %s157 = sphi 0, %s143
      %s161 = sphi 0, %s161
      %s163 = sphi 0, %s161
      %s164 = sphi 0, %s163
      %s178 = sphi 0, %s164
      %s182 = sphi 0, %s182
      %s184 = sphi 0, %s182
      %s185 = sphi 0, %s184
      %s199 = sphi 0, %s185
      %s203 = sphi 0, %s203
      %s205 = sphi 0, %s203
      %s206 = sphi 0, %s205
      %s220 = sphi 0, %s206
      %s224 = sphi 0, %s224
      %s226 = sphi 0, %s224
      %s227 = sphi 0, %s226
      %s241 = sphi 0, %s227
      %s245 = sphi 0, %s245
      %s247 = sphi 0, %s245
      %s248 = sphi 0, %s247
      %s262 = sphi 0, %s248
      %s266 = sphi 0, %s266
      %s268 = sphi 0, %s266
      %s269 = sphi 0, %s268
      %s283 = sphi 0, %s269
      %s287 = sphi 0, %s287
      %s289 = sphi 0, %s287
      %s290 = sphi 0, %s289
      %s304 = sphi 0, %s290
      %s310 = sphi 0, %s312
      %s313 = sphi 0, %s310
      %s314 = sphi 0, %s313
      %s330 = sphi 0, %s314
    $region4: #{pixel_network_forward.1} parent=1 // loop_header_branch
      %25 = sbr.rel (%p23) target = $region8
    $region5: #{pixel_network_forward.1} parent=1 // loop_body
      %s27 = ssub.s32 %s22, 1
      %s28 = ssub.s32 %s22, 2
      %s29 = sadd.s32 %s22, 1
      %s30 = ssub.s32 %s22, %s29
      %p31 = scmp.eq.s32.totalorder %s30, 0
      %s33 = sadd.s32 %s32, 1
      %s34 = scalar_select %p31, %s32, %s33
      %p37 = pneg %p31
      %p38 = scmp.eq.s32.totalorder %s22, 1
      %p39 = por %p37, %p38
      %p40 = scmp.ne.s32.totalorder %s32, %s35
      %p41 = scmp.eq.s32.totalorder %s22, 0
      %p42 = por %p40, %p41
      %p43 = scmp.ne.s32.totalorder %s32, %s35
      %p44 = scmp.eq.s32.totalorder %s27, 1
      %p45 = por %p43, %p44
      %p46 = scmp.ne.s32.totalorder %s35, %s36
      %p47 = scmp.eq.s32.totalorder %s27, 0
      %p48 = por %p46, %p47
      %p49 = scmp.ne.s32.totalorder %s35, %s36
      %p50 = scmp.eq.s32.totalorder %s28, 1
      %p51 = por %p49, %p50
      %p53 = scmp.ne.s32.totalorder %s36, %s52
      %p54 = scmp.eq.s32.totalorder %s28, 0
      %p55 = por %p53, %p54
      %s57 = sadd.s32 %s56, 1
      %p60 = scmp.eq.s32.totalorder %s22, 1
      %p61 = scmp.ne.s32.totalorder %s56, %s58
      %p62 = scmp.eq.s32.totalorder %s22, 0
      %p63 = por %p61, %p62
      %p64 = scmp.ne.s32.totalorder %s56, %s58
      %p65 = scmp.eq.s32.totalorder %s27, 1
      %p66 = por %p64, %p65
      %p67 = scmp.ne.s32.totalorder %s58, %s59
      %p68 = scmp.eq.s32.totalorder %s27, 0
      %p69 = por %p67, %p68
      %p70 = scmp.ne.s32.totalorder %s58, %s59
      %p71 = scmp.eq.s32.totalorder %s28, 1
      %p72 = por %p70, %p71
      %p74 = scmp.ne.s32.totalorder %s59, %s73
      %p75 = scmp.eq.s32.totalorder %s28, 0
      %p76 = por %p74, %p75
      %s78 = sadd.s32 %s77, 1
      %p81 = scmp.eq.s32.totalorder %s22, 1
      %p82 = scmp.ne.s32.totalorder %s77, %s79
      %p83 = scmp.eq.s32.totalorder %s22, 0
      %p84 = por %p82, %p83
      %p85 = scmp.ne.s32.totalorder %s77, %s79
      %p86 = scmp.eq.s32.totalorder %s27, 1
      %p87 = por %p85, %p86
      %p88 = scmp.ne.s32.totalorder %s79, %s80
      %p89 = scmp.eq.s32.totalorder %s27, 0
      %p90 = por %p88, %p89
      %p91 = scmp.ne.s32.totalorder %s79, %s80
      %p92 = scmp.eq.s32.totalorder %s28, 1
      %p93 = por %p91, %p92
      %p95 = scmp.ne.s32.totalorder %s80, %s94
      %p96 = scmp.eq.s32.totalorder %s28, 0
      %p97 = por %p95, %p96
      %s99 = sadd.s32 %s98, 1
      %p102 = scmp.eq.s32.totalorder %s22, 1
      %p103 = scmp.ne.s32.totalorder %s98, %s100
      %p104 = scmp.eq.s32.totalorder %s22, 0
      %p105 = por %p103, %p104
      %p106 = scmp.ne.s32.totalorder %s98, %s100
      %p107 = scmp.eq.s32.totalorder %s27, 1
      %p108 = por %p106, %p107
      %p109 = scmp.ne.s32.totalorder %s100, %s101
      %p110 = scmp.eq.s32.totalorder %s27, 0
      %p111 = por %p109, %p110
      %p112 = scmp.ne.s32.totalorder %s100, %s101
      %p113 = scmp.eq.s32.totalorder %s28, 1
      %p114 = por %p112, %p113
      %p116 = scmp.ne.s32.totalorder %s101, %s115
      %p117 = scmp.eq.s32.totalorder %s28, 0
      %p118 = por %p116, %p117
      %s120 = sadd.s32 %s119, 1
      %p123 = scmp.eq.s32.totalorder %s22, 1
      %p124 = scmp.ne.s32.totalorder %s119, %s121
      %p125 = scmp.eq.s32.totalorder %s22, 0
      %p126 = por %p124, %p125
      %p127 = scmp.ne.s32.totalorder %s119, %s121
      %p128 = scmp.eq.s32.totalorder %s27, 1
      %p129 = por %p127, %p128
      %p130 = scmp.ne.s32.totalorder %s121, %s122
      %p131 = scmp.eq.s32.totalorder %s27, 0
      %p132 = por %p130, %p131
      %p133 = scmp.ne.s32.totalorder %s121, %s122
      %p134 = scmp.eq.s32.totalorder %s28, 1
      %p135 = por %p133, %p134
      %p137 = scmp.ne.s32.totalorder %s122, %s136
      %p138 = scmp.eq.s32.totalorder %s28, 0
      %p139 = por %p137, %p138
      %s141 = sadd.s32 %s140, 1
      %p144 = scmp.eq.s32.totalorder %s22, 1
      %p145 = scmp.ne.s32.totalorder %s140, %s142
      %p146 = scmp.eq.s32.totalorder %s22, 0
      %p147 = por %p145, %p146
      %p148 = scmp.ne.s32.totalorder %s140, %s142
      %p149 = scmp.eq.s32.totalorder %s27, 1
      %p150 = por %p148, %p149
      %p151 = scmp.ne.s32.totalorder %s142, %s143
      %p152 = scmp.eq.s32.totalorder %s27, 0
      %p153 = por %p151, %p152
      %p154 = scmp.ne.s32.totalorder %s142, %s143
      %p155 = scmp.eq.s32.totalorder %s28, 1
      %p156 = por %p154, %p155
      %p158 = scmp.ne.s32.totalorder %s143, %s157
      %p159 = scmp.eq.s32.totalorder %s28, 0
      %p160 = por %p158, %p159
      %s162 = sadd.s32 %s161, 1
      %p165 = scmp.eq.s32.totalorder %s22, 1
      %p166 = scmp.ne.s32.totalorder %s161, %s163
      %p167 = scmp.eq.s32.totalorder %s22, 0
      %p168 = por %p166, %p167
      %p169 = scmp.ne.s32.totalorder %s161, %s163
      %p170 = scmp.eq.s32.totalorder %s27, 1
      %p171 = por %p169, %p170
      %p172 = scmp.ne.s32.totalorder %s163, %s164
      %p173 = scmp.eq.s32.totalorder %s27, 0
      %p174 = por %p172, %p173
      %p175 = scmp.ne.s32.totalorder %s163, %s164
      %p176 = scmp.eq.s32.totalorder %s28, 1
      %p177 = por %p175, %p176
      %p179 = scmp.ne.s32.totalorder %s164, %s178
      %p180 = scmp.eq.s32.totalorder %s28, 0
      %p181 = por %p179, %p180
      %s183 = sadd.s32 %s182, 1
      %p186 = scmp.eq.s32.totalorder %s22, 1
      %p187 = scmp.ne.s32.totalorder %s182, %s184
      %p188 = scmp.eq.s32.totalorder %s22, 0
      %p189 = por %p187, %p188
      %p190 = scmp.ne.s32.totalorder %s182, %s184
      %p191 = scmp.eq.s32.totalorder %s27, 1
      %p192 = por %p190, %p191
      %p193 = scmp.ne.s32.totalorder %s184, %s185
      %p194 = scmp.eq.s32.totalorder %s27, 0
      %p195 = por %p193, %p194
      %p196 = scmp.ne.s32.totalorder %s184, %s185
      %p197 = scmp.eq.s32.totalorder %s28, 1
      %p198 = por %p196, %p197
      %p200 = scmp.ne.s32.totalorder %s185, %s199
      %p201 = scmp.eq.s32.totalorder %s28, 0
      %p202 = por %p200, %p201
      %s204 = sadd.s32 %s203, 1
      %p207 = scmp.eq.s32.totalorder %s22, 1
      %p208 = scmp.ne.s32.totalorder %s203, %s205
      %p209 = scmp.eq.s32.totalorder %s22, 0
      %p210 = por %p208, %p209
      %p211 = scmp.ne.s32.totalorder %s203, %s205
      %p212 = scmp.eq.s32.totalorder %s27, 1
      %p213 = por %p211, %p212
      %p214 = scmp.ne.s32.totalorder %s205, %s206
      %p215 = scmp.eq.s32.totalorder %s27, 0
      %p216 = por %p214, %p215
      %p217 = scmp.ne.s32.totalorder %s205, %s206
      %p218 = scmp.eq.s32.totalorder %s28, 1
      %p219 = por %p217, %p218
      %p221 = scmp.ne.s32.totalorder %s206, %s220
      %p222 = scmp.eq.s32.totalorder %s28, 0
      %p223 = por %p221, %p222
      %s225 = sadd.s32 %s224, 1
      %p228 = scmp.eq.s32.totalorder %s22, 1
      %p229 = scmp.ne.s32.totalorder %s224, %s226
      %p230 = scmp.eq.s32.totalorder %s22, 0
      %p231 = por %p229, %p230
      %p232 = scmp.ne.s32.totalorder %s224, %s226
      %p233 = scmp.eq.s32.totalorder %s27, 1
      %p234 = por %p232, %p233
      %p235 = scmp.ne.s32.totalorder %s226, %s227
      %p236 = scmp.eq.s32.totalorder %s27, 0
      %p237 = por %p235, %p236
      %p238 = scmp.ne.s32.totalorder %s226, %s227
      %p239 = scmp.eq.s32.totalorder %s28, 1
      %p240 = por %p238, %p239
      %p242 = scmp.ne.s32.totalorder %s227, %s241
      %p243 = scmp.eq.s32.totalorder %s28, 0
      %p244 = por %p242, %p243
      %s246 = sadd.s32 %s245, 1
      %p249 = scmp.eq.s32.totalorder %s22, 1
      %p250 = scmp.ne.s32.totalorder %s245, %s247
      %p251 = scmp.eq.s32.totalorder %s22, 0
      %p252 = por %p250, %p251
      %p253 = scmp.ne.s32.totalorder %s245, %s247
      %p254 = scmp.eq.s32.totalorder %s27, 1
      %p255 = por %p253, %p254
      %p256 = scmp.ne.s32.totalorder %s247, %s248
      %p257 = scmp.eq.s32.totalorder %s27, 0
      %p258 = por %p256, %p257
      %p259 = scmp.ne.s32.totalorder %s247, %s248
      %p260 = scmp.eq.s32.totalorder %s28, 1
      %p261 = por %p259, %p260
      %p263 = scmp.ne.s32.totalorder %s248, %s262
      %p264 = scmp.eq.s32.totalorder %s28, 0
      %p265 = por %p263, %p264
      %s267 = sadd.s32 %s266, 1
      %p270 = scmp.eq.s32.totalorder %s22, 1
      %p271 = scmp.ne.s32.totalorder %s266, %s268
      %p272 = scmp.eq.s32.totalorder %s22, 0
      %p273 = por %p271, %p272
      %p274 = scmp.ne.s32.totalorder %s266, %s268
      %p275 = scmp.eq.s32.totalorder %s27, 1
      %p276 = por %p274, %p275
      %p277 = scmp.ne.s32.totalorder %s268, %s269
      %p278 = scmp.eq.s32.totalorder %s27, 0
      %p279 = por %p277, %p278
      %p280 = scmp.ne.s32.totalorder %s268, %s269
      %p281 = scmp.eq.s32.totalorder %s28, 1
      %p282 = por %p280, %p281
      %p284 = scmp.ne.s32.totalorder %s269, %s283
      %p285 = scmp.eq.s32.totalorder %s28, 0
      %p286 = por %p284, %p285
      %s288 = sadd.s32 %s287, 1
      %p291 = scmp.eq.s32.totalorder %s22, 1
      %p292 = scmp.ne.s32.totalorder %s287, %s289
      %p293 = scmp.eq.s32.totalorder %s22, 0
      %p294 = por %p292, %p293
      %p295 = scmp.ne.s32.totalorder %s287, %s289
      %p296 = scmp.eq.s32.totalorder %s27, 1
      %p297 = por %p295, %p296
      %p298 = scmp.ne.s32.totalorder %s289, %s290
      %p299 = scmp.eq.s32.totalorder %s27, 0
      %p300 = por %p298, %p299
      %p301 = scmp.ne.s32.totalorder %s289, %s290
      %p302 = scmp.eq.s32.totalorder %s28, 1
      %p303 = por %p301, %p302
      %p305 = scmp.ne.s32.totalorder %s290, %s304
      %p306 = scmp.eq.s32.totalorder %s28, 0
      %p307 = por %p305, %p306
      %s308 = ssub.s32 %s22, %s29
      %p309 = scmp.eq.s32.totalorder %s308, 0
      %s311 = sadd.s32 %s310, 1
      %s312 = scalar_select %p309, %s310, %s311
      %p315 = pneg %p309
      %p316 = scmp.eq.s32.totalorder %s22, 1
      %p317 = por %p315, %p316
      %p318 = scmp.ne.s32.totalorder %s310, %s313
      %p319 = scmp.eq.s32.totalorder %s22, 0
      %p320 = por %p318, %p319
      %p321 = scmp.ne.s32.totalorder %s310, %s313
      %p322 = scmp.eq.s32.totalorder %s27, 1
      %p323 = por %p321, %p322
      %p324 = scmp.ne.s32.totalorder %s313, %s314
      %p325 = scmp.eq.s32.totalorder %s27, 0
      %p326 = por %p324, %p325
      %p327 = scmp.ne.s32.totalorder %s313, %s314
      %p328 = scmp.eq.s32.totalorder %s28, 1
      %p329 = por %p327, %p328
      %p331 = scmp.ne.s32.totalorder %s314, %s330
      %p332 = scmp.eq.s32.totalorder %s28, 0
      %p333 = por %p331, %p332
      %p334 = scmp.le.s32.totalorder 1, %s22
      %p335 = scmp.lt.s32.totalorder %s22, 3
      %p336 = pnand %p334, %p335
      %p337 = pneg %p336
      // Predicated region
      $region9: #{pixel_network_forward.1} parent=5 // pred_check
        _
      $region10: #{pixel_network_forward.1} parent=5 // pred_check_branch
        %339 = sbr.rel (%p336) target = $region12
      $region11: #{pixel_network_forward.1} parent=5 // pred_region
        %s340 = ssub.s32 %s22, 1
        // Predicated region
        $region13: #{pixel_network_forward.1} parent=11 // pred_check
          %p341 = pneg %p69
        $region14: #{pixel_network_forward.1} parent=11 // pred_check_branch
          %343 = sbr.rel (%p341) target = $region16
        $region15: #{pixel_network_forward.1} parent=11 // pred_region
          _
        $region16: #{pixel_network_forward.1} parent=11 // pred_fallthru
          _
        // Predicated region
        $region17: #{pixel_network_forward.1} parent=11 // pred_check
          %p344 = pneg %p90
        $region18: #{pixel_network_forward.1} parent=11 // pred_check_branch
          %346 = sbr.rel (%p344) target = $region20
        $region19: #{pixel_network_forward.1} parent=11 // pred_region
          _
        $region20: #{pixel_network_forward.1} parent=11 // pred_fallthru
          _
        // Predicated region
        $region21: #{pixel_network_forward.1} parent=11 // pred_check
          %p347 = pneg %p111
        $region22: #{pixel_network_forward.1} parent=11 // pred_check_branch
          %349 = sbr.rel (%p347) target = $region24
        $region23: #{pixel_network_forward.1} parent=11 // pred_region
          _
        $region24: #{pixel_network_forward.1} parent=11 // pred_fallthru
          _
        // Predicated region
        $region25: #{pixel_network_forward.1} parent=11 // pred_check
          %p350 = pneg %p132
        $region26: #{pixel_network_forward.1} parent=11 // pred_check_branch
          %352 = sbr.rel (%p350) target = $region28
        $region27: #{pixel_network_forward.1} parent=11 // pred_region
          _
        $region28: #{pixel_network_forward.1} parent=11 // pred_fallthru
          _
        // Predicated region
        $region29: #{pixel_network_forward.1} parent=11 // pred_check
          %p353 = pneg %p153
        $region30: #{pixel_network_forward.1} parent=11 // pred_check_branch
          %355 = sbr.rel (%p353) target = $region32
        $region31: #{pixel_network_forward.1} parent=11 // pred_region
          _
        $region32: #{pixel_network_forward.1} parent=11 // pred_fallthru
          _
        // Predicated region
        $region33: #{pixel_network_forward.1} parent=11 // pred_check
          %p356 = pneg %p174
        $region34: #{pixel_network_forward.1} parent=11 // pred_check_branch
          %358 = sbr.rel (%p356) target = $region36
        $region35: #{pixel_network_forward.1} parent=11 // pred_region
          _
        $region36: #{pixel_network_forward.1} parent=11 // pred_fallthru
          _
        // Predicated region
        $region37: #{pixel_network_forward.1} parent=11 // pred_check
          %p359 = pneg %p195
        $region38: #{pixel_network_forward.1} parent=11 // pred_check_branch
          %361 = sbr.rel (%p359) target = $region40
        $region39: #{pixel_network_forward.1} parent=11 // pred_region
          _
        $region40: #{pixel_network_forward.1} parent=11 // pred_fallthru
          _
        // Predicated region
        $region41: #{pixel_network_forward.1} parent=11 // pred_check
          %p362 = pneg %p216
        $region42: #{pixel_network_forward.1} parent=11 // pred_check_branch
          %364 = sbr.rel (%p362) target = $region44
        $region43: #{pixel_network_forward.1} parent=11 // pred_region
          _
        $region44: #{pixel_network_forward.1} parent=11 // pred_fallthru
          _
        // Predicated region
        $region45: #{pixel_network_forward.1} parent=11 // pred_check
          %p365 = pneg %p237
        $region46: #{pixel_network_forward.1} parent=11 // pred_check_branch
          %367 = sbr.rel (%p365) target = $region48
        $region47: #{pixel_network_forward.1} parent=11 // pred_region
          _
        $region48: #{pixel_network_forward.1} parent=11 // pred_fallthru
          _
        // Predicated region
        $region49: #{pixel_network_forward.1} parent=11 // pred_check
          %p368 = pneg %p258
        $region50: #{pixel_network_forward.1} parent=11 // pred_check_branch
          %370 = sbr.rel (%p368) target = $region52
        $region51: #{pixel_network_forward.1} parent=11 // pred_region
          _
        $region52: #{pixel_network_forward.1} parent=11 // pred_fallthru
          _
        // Predicated region
        $region53: #{pixel_network_forward.1} parent=11 // pred_check
          %p371 = pneg %p279
        $region54: #{pixel_network_forward.1} parent=11 // pred_check_branch
          %373 = sbr.rel (%p371) target = $region56
        $region55: #{pixel_network_forward.1} parent=11 // pred_region
          _
        $region56: #{pixel_network_forward.1} parent=11 // pred_fallthru
          _
        // Predicated region
        $region57: #{pixel_network_forward.1} parent=11 // pred_check
          %p374 = pneg %p300
        $region58: #{pixel_network_forward.1} parent=11 // pred_check_branch
          %376 = sbr.rel (%p374) target = $region60
        $region59: #{pixel_network_forward.1} parent=11 // pred_region
          _
        $region60: #{pixel_network_forward.1} parent=11 // pred_fallthru
          _
      $region12: #{pixel_network_forward.1} parent=5 // pred_fallthru
        _
      %p377 = scmp.lt.s32.totalorder %s22, 2
      // Predicated region
      $region61: #{pixel_network_forward.1} parent=5 // pred_check
        %p378 = pneg %p377
      $region62: #{pixel_network_forward.1} parent=5 // pred_check_branch
        %380 = sbr.rel (%p378) target = $region64
      $region63: #{pixel_network_forward.1} parent=5 // pred_region
        // Predicated region
        $region65: #{pixel_network_forward.1} parent=63 // pred_check
          %p381 = pneg %p42
        $region66: #{pixel_network_forward.1} parent=63 // pred_check_branch
          %383 = sbr.rel (%p381) target = $region68
        $region67: #{pixel_network_forward.1} parent=63 // pred_region
          %p384 = scmp.lt.s32.totalorder %s22, 1
          %s385 = scalar_select %p384, %s22, 1
          %s386 = smul.addr %s385, 20
          %s387 = smul.addr %s386, 4
          %s388 = scalar_lea.vmem %s0, %s387
        $region68: #{pixel_network_forward.1} parent=63 // pred_fallthru
          _
      $region64: #{pixel_network_forward.1} parent=5 // pred_fallthru
        _
      %p389 = scmp.le.s32.totalorder 1, %s22
      %p390 = scmp.lt.s32.totalorder %s22, 3
      %p391 = pnand %p389, %p390
      %p392 = pneg %p391
      // Predicated region
      $region69: #{pixel_network_forward.1} parent=5 // pred_check
        _
      $region70: #{pixel_network_forward.1} parent=5 // pred_check_branch
        %394 = sbr.rel (%p391) target = $region72
      $region71: #{pixel_network_forward.1} parent=5 // pred_region
        %s395 = ssub.s32 %s22, 1
        %p396 = scmp.lt.s32.totalorder %s27, 1
        %s397 = scalar_select %p396, %s27, 1
        %s398 = smul.addr %s397, 20
        %s399 = smul.addr %s398, 4
        %s400 = scalar_lea.vmem %s0, %s399
        %p401 = pneg %p48
        %p402 = pneg %p45
        %p403 = pneg %p69
        %p404 = pneg %p66
        %p405 = pneg %p90
        %p406 = pneg %p87
        %p407 = pneg %p111
        %p408 = pneg %p108
        %p409 = pneg %p132
        %p410 = pneg %p129
        %p411 = pneg %p153
        %p412 = pneg %p150
        %p413 = pneg %p174
        %p414 = pneg %p171
        %p415 = pneg %p195
        %p416 = pneg %p192
        %p417 = pneg %p216
        %p418 = pneg %p213
        %p419 = pneg %p237
        %p420 = pneg %p234
        %p421 = pneg %p258
        %p422 = pneg %p255
        %p423 = pneg %p279
        %p424 = pneg %p276
        %p425 = pneg %p300
        %p426 = pneg %p297
        %p427 = pneg %p326
        %p428 = pneg %p323
        %s429 = sand.u32 %s313, 1
        %s430 = scalar_lea.sflag [#allocation3], %s429
        %s431 = sand.u32 %s313, 1
        %s432 = scalar_lea.vmem [#allocation2], %s431
        %p433 = scmp.lt.s32.totalorder %s27, 1
        %s434 = scalar_select %p433, %s27, 1
        %s435 = smul.addr %s434, 20
        %s436 = smul.addr %s435, 4
        %s437 = scalar_lea.vmem %s0, %s436
        %v439 = vld [vmem:[%s437] sm:$0xff]
        %v440 = vld [vmem:[%s437 + $0x8] sm:$0xff]
        %v441 = vld [vmem:[%s437 + $0x10] sm:$0xff]
        %v442 = vld [vmem:[%s437 + $0x18] sm:$0xff]
        %v443 = vld [vmem:[%s437 + $0x20] sm:$0xff]
        %v444 = vld [vmem:[%s437 + $0x28] sm:$0xff]
        %v445 = vld [vmem:[%s437 + $0x30] sm:$0xff]
        %v446 = vld [vmem:[%s437 + $0x38] sm:$0xff]
        %v447 = vld [vmem:[%s437 + $0x40] sm:$0xff]
        %v448 = vld [vmem:[%s437 + $0x48] sm:$0xff]
        %v449 = vld [vmem:[%s1] sm:$0xf]
        %v450 = vld [vmem:[%s1 + $0x4] sm:$0xf]
        %v451 = vld [vmem:[%s1 + $0x8] sm:$0xf]
        %v452 = vld [vmem:[%s1 + $0xc] sm:$0xf]
        %v453 = vld [vmem:[%s1 + $0x10] sm:$0xf]
        %v454 = vld [vmem:[%s1 + $0x14] sm:$0xf]
        %v455 = vld [vmem:[%s1 + $0x18] sm:$0xf]
        %v456 = vld [vmem:[%s1 + $0x1c] sm:$0xf]
        %v457 = vld [vmem:[%s1 + $0x20] sm:$0xf]
        %v458 = vld [vmem:[%s1 + $0x24] sm:$0xf]
        %v459 = vld [vmem:[%s1 + $0x28] sm:$0xf]
        %v460 = vld [vmem:[%s1 + $0x2c] sm:$0xf]
        %v461 = vld [vmem:[%s1 + $0x30] sm:$0xf]
        %v462 = vld [vmem:[%s1 + $0x34] sm:$0xf]
        %v463 = vld [vmem:[%s1 + $0x38] sm:$0xf]
        %v464 = vld [vmem:[%s1 + $0x3c] sm:$0xf]
        %v465 = vld [vmem:[%s1 + $0x40] sm:$0xf]
        %v466 = vld [vmem:[%s1 + $0x44] sm:$0xf]
        %v467 = vld [vmem:[%s1 + $0x48] sm:$0xf]
        %v468 = vld [vmem:[%s1 + $0x4c] sm:$0xf]
        %v469 = vld [vmem:[%s1 + $0x50] sm:$0xf]
        %v470 = vld [vmem:[%s1 + $0x54] sm:$0xf]
        %v471 = vld [vmem:[%s1 + $0x58] sm:$0xf]
        %v472 = vld [vmem:[%s1 + $0x5c] sm:$0xf]
        %v473 = vld [vmem:[%s1 + $0x60] sm:$0xf]
        %v474 = vld [vmem:[%s1 + $0x64] sm:$0xf]
        %v475 = vld [vmem:[%s1 + $0x68] sm:$0xf]
        %v476 = vld [vmem:[%s1 + $0x6c] sm:$0xf]
        %v477 = vld [vmem:[%s1 + $0x70] sm:$0xf]
        %v478 = vld [vmem:[%s1 + $0x74] sm:$0xf]
        %v479 = vld [vmem:[%s1 + $0x78] sm:$0xf]
        %v480 = vld [vmem:[%s1 + $0x7c] sm:$0xf]
        %v481 = vld [vmem:[%s2] sm:$0x1]
        %v483 = vlaneseq
        %v484 = vshrl.u32 %v483, 7
        %v485 = vsub.s32 0, %v484
        %v486 = vrot.slane %v481, %v485
        %v498 = vunpack.c.l.b16 %v439
        %v499 = vunpack.c.h.b16 %v439
        %v500 = vunpack.c.l.b16 %v440
        %v501 = vunpack.c.h.b16 %v440
        %v502 = vunpack.c.l.b16 %v441
        %v503 = vunpack.c.h.b16 %v441
        %v504 = vunpack.c.l.b16 %v442
        %v505 = vunpack.c.h.b16 %v442
        %v506 = vunpack.c.l.b16 %v443
        %v507 = vunpack.c.h.b16 %v443
        %v508 = vunpack.c.l.b16 %v444
        %v509 = vunpack.c.h.b16 %v444
        %v510 = vunpack.c.l.b16 %v445
        %v511 = vunpack.c.h.b16 %v445
        %v512 = vunpack.c.l.b16 %v446
        %v513 = vunpack.c.h.b16 %v446
        %v514 = vunpack.c.l.b16 %v447
        %v515 = vunpack.c.h.b16 %v447
        %v516 = vunpack.c.l.b16 %v448
        %v517 = vunpack.c.h.b16 %v448
        %v518 = vpack.c.b16 %v500, %v498
        %v519 = vpack.c.b16 %v501, %v499
        %v520 = vpack.c.b16 %v504, %v502
        %v521 = vpack.c.b16 %v505, %v503
        %v522 = vpack.c.b16 %v508, %v506
        %v523 = vpack.c.b16 %v509, %v507
        %v524 = vpack.c.b16 %v512, %v510
        %v525 = vpack.c.b16 %v513, %v511
        %v526 = vpack.c.b16 %v516, %v514
        %v527 = vpack.c.b16 %v517, %v515
        %v570 = vunpack.c.l.b16 %v449
        %v571 = vunpack.c.l.b16 %v450
        %v572 = vunpack.c.l.b16 %v451
        %v573 = vunpack.c.l.b16 %v452
        %v574 = vunpack.c.l.b16 %v453
        %v575 = vunpack.c.l.b16 %v454
        %v576 = vunpack.c.l.b16 %v455
        %v577 = vunpack.c.l.b16 %v456
        %v578 = vunpack.c.l.b16 %v457
        %v579 = vunpack.c.l.b16 %v458
        %v580 = vunpack.c.l.b16 %v459
        %v581 = vunpack.c.l.b16 %v460
        %v582 = vunpack.c.l.b16 %v461
        %v583 = vunpack.c.l.b16 %v462
        %v584 = vunpack.c.l.b16 %v463
        %v585 = vunpack.c.l.b16 %v464
        %v586 = vunpack.c.l.b16 %v465
        %v587 = vunpack.c.l.b16 %v466
        %v588 = vunpack.c.l.b16 %v467
        %v589 = vunpack.c.l.b16 %v468
        %v590 = vunpack.c.l.b16 %v469
        %v591 = vunpack.c.l.b16 %v470
        %v592 = vunpack.c.l.b16 %v471
        %v593 = vunpack.c.l.b16 %v472
        %v594 = vunpack.c.l.b16 %v473
        %v595 = vunpack.c.l.b16 %v474
        %v596 = vunpack.c.l.b16 %v475
        %v597 = vunpack.c.l.b16 %v476
        %v598 = vunpack.c.l.b16 %v477
        %v599 = vunpack.c.l.b16 %v478
        %v600 = vunpack.c.l.b16 %v479
        %v601 = vunpack.c.l.b16 %v480
        %v602 = vpack.c.b16 %v571, %v570
        %v603 = vpack.c.b16 %v573, %v572
        %v604 = vpack.c.b16 %v575, %v574
        %v605 = vpack.c.b16 %v577, %v576
        %v606 = vpack.c.b16 %v579, %v578
        %v607 = vpack.c.b16 %v581, %v580
        %v608 = vpack.c.b16 %v583, %v582
        %v609 = vpack.c.b16 %v585, %v584
        %v610 = vpack.c.b16 %v587, %v586
        %v611 = vpack.c.b16 %v589, %v588
        %v612 = vpack.c.b16 %v591, %v590
        %v613 = vpack.c.b16 %v593, %v592
        %v614 = vpack.c.b16 %v595, %v594
        %v615 = vpack.c.b16 %v597, %v596
        %v616 = vpack.c.b16 %v599, %v598
        %v617 = vpack.c.b16 %v601, %v600
        %634 = vmatprep.subr.bf16.mxu0 0
        %635 = vmatpush1.bf16.msra.mxu0 %v602
        %636 = vmatprep.subr.bf16.mxu0 0
        %637 = vmatpush1.bf16.msra.mxu0 %v603
        %638 = vmatprep.subr.bf16.mxu0 0
        %639 = vmatpush1.bf16.msra.mxu0 %v604
        %640 = vmatprep.subr.bf16.mxu0 0
        %641 = vmatpush1.bf16.msra.mxu0 %v605
        %642 = vmatprep.subr.bf16.mxu0 0
        %643 = vmatpush1.bf16.msra.mxu0 %v606
        %644 = vmatprep.subr.bf16.mxu0 0
        %645 = vmatpush1.bf16.msra.mxu0 %v607
        %646 = vmatprep.subr.bf16.mxu0 0
        %647 = vmatpush1.bf16.msra.mxu0 %v608
        %648 = vmatprep.subr.bf16.mxu0 0
        %649 = vmatpush1.bf16.msra.mxu0 %v609
        %650 = vmatprep.subr.bf16.mxu0 0
        %651 = vmatpush1.bf16.msra.mxu0 %v610
        %652 = vmatprep.subr.bf16.mxu0 0
        %653 = vmatpush1.bf16.msra.mxu0 %v611
        %654 = vmatprep.subr.bf16.mxu0 0
        %655 = vmatpush1.bf16.msra.mxu0 %v612
        %656 = vmatprep.subr.bf16.mxu0 0
        %657 = vmatpush1.bf16.msra.mxu0 %v613
        %658 = vmatprep.subr.bf16.mxu0 0
        %659 = vmatpush1.bf16.msra.mxu0 %v614
        %660 = vmatprep.subr.bf16.mxu0 0
        %661 = vmatpush1.bf16.msra.mxu0 %v615
        %662 = vmatprep.subr.bf16.mxu0 0
        %663 = vmatpush1.bf16.msra.mxu0 %v616
        %664 = vmatprep.subr.bf16.mxu0 0
        %665 = vmatpush1.bf16.msra.mxu0 %v617
        %666 = vmatprep.mubr.bf16.mxu0 %v519
        %667 = vmatmul.mubr.bf16.gmra.mrb[0].mxu0 %v518
        %v668 = vpop.f32.mrb[0].mxu0
        %v669 = vadd.f32 %v486, %v668
        %v670 = vpop.f32.mrb[0].mxu0
        %v671 = vpop.f32.mrb[0].mxu0
        %v672 = vadd.f32 %v486, %v671
        %v673 = vpop.f32.mrb[0].mxu0
        %674 = vmatprep.mubr.bf16.mxu0 %v521
        %675 = vmatmul.mubr.bf16.gmra.mrb[0].mxu0 %v520
        %v676 = vpop.f32.mrb[0].mxu0
        %v677 = vadd.f32 %v486, %v676
        %v678 = vpop.f32.mrb[0].mxu0
        %v679 = vpop.f32.mrb[0].mxu0
        %v680 = vadd.f32 %v486, %v679
        %v681 = vpop.f32.mrb[0].mxu0
        %682 = vmatprep.mubr.bf16.mxu0 %v523
        %683 = vmatmul.mubr.bf16.gmra.mrb[0].mxu0 %v522
        %v684 = vpop.f32.mrb[0].mxu0
        %v685 = vadd.f32 %v486, %v684
        %v686 = vpop.f32.mrb[0].mxu0
        %v687 = vpop.f32.mrb[0].mxu0
        %v688 = vadd.f32 %v486, %v687
        %v689 = vpop.f32.mrb[0].mxu0
        %690 = vmatprep.mubr.bf16.mxu0 %v525
        %691 = vmatmul.mubr.bf16.gmra.mrb[0].mxu0 %v524
        %v692 = vpop.f32.mrb[0].mxu0
        %v693 = vadd.f32 %v486, %v692
        %v694 = vpop.f32.mrb[0].mxu0
        %v695 = vpop.f32.mrb[0].mxu0
        %v696 = vadd.f32 %v486, %v695
        %v697 = vpop.f32.mrb[0].mxu0
        %698 = vmatprep.mubr.bf16.mxu0 %v527
        %699 = vmatmul.mubr.bf16.gmra.mrb[0].mxu0 %v526
        %v700 = vpop.f32.mrb[0].mxu0
        %v701 = vadd.f32 %v486, %v700
        %v702 = vpop.f32.mrb[0].mxu0
        %v703 = vpop.f32.mrb[0].mxu0
        %v704 = vadd.f32 %v486, %v703
        %v705 = vpop.f32.mrb[0].mxu0
        %706 = vdwg.mxu0
        %v707 = vmax.f32 %v669, 0.0
        %v708 = vmax.f32 %v672, 0.0
        %v709 = vmax.f32 %v677, 0.0
        %v710 = vmax.f32 %v680, 0.0
        %v711 = vmax.f32 %v685, 0.0
        %v712 = vmax.f32 %v688, 0.0
        %v713 = vmax.f32 %v693, 0.0
        %v714 = vmax.f32 %v696, 0.0
        %v715 = vmax.f32 %v701, 0.0
        %v716 = vmax.f32 %v704, 0.0
        %v717 = vpack.c.bf16 %v708, %v707
        %v718 = vpack.c.bf16 %v710, %v709
        %v719 = vpack.c.bf16 %v712, %v711
        %v720 = vpack.c.bf16 %v714, %v713
        %v721 = vpack.c.bf16 %v716, %v715
        %v722 = vld [vmem:[%s3] sm:$0xf]
        %v723 = vld [vmem:[%s3 + $0x4] sm:$0xf]
        %v724 = vld [vmem:[%s3 + $0x8] sm:$0xf]
        %v725 = vld [vmem:[%s3 + $0xc] sm:$0xf]
        %v726 = vld [vmem:[%s3 + $0x10] sm:$0xf]
        %v727 = vld [vmem:[%s3 + $0x14] sm:$0xf]
        %v728 = vld [vmem:[%s3 + $0x18] sm:$0xf]
        %v729 = vld [vmem:[%s3 + $0x1c] sm:$0xf]
        %v730 = vld [vmem:[%s3 + $0x20] sm:$0xf]
        %v731 = vld [vmem:[%s3 + $0x24] sm:$0xf]
        %v732 = vld [vmem:[%s3 + $0x28] sm:$0xf]
        %v733 = vld [vmem:[%s3 + $0x2c] sm:$0xf]
        %v734 = vld [vmem:[%s3 + $0x30] sm:$0xf]
        %v735 = vld [vmem:[%s3 + $0x34] sm:$0xf]
        %v736 = vld [vmem:[%s3 + $0x38] sm:$0xf]
        %v737 = vld [vmem:[%s3 + $0x3c] sm:$0xf]
        %v738 = vld [vmem:[%s3 + $0x40] sm:$0xf]
        %v739 = vld [vmem:[%s3 + $0x44] sm:$0xf]
        %v740 = vld [vmem:[%s3 + $0x48] sm:$0xf]
        %v741 = vld [vmem:[%s3 + $0x4c] sm:$0xf]
        %v742 = vld [vmem:[%s3 + $0x50] sm:$0xf]
        %v743 = vld [vmem:[%s3 + $0x54] sm:$0xf]
        %v744 = vld [vmem:[%s3 + $0x58] sm:$0xf]
        %v745 = vld [vmem:[%s3 + $0x5c] sm:$0xf]
        %v746 = vld [vmem:[%s3 + $0x60] sm:$0xf]
        %v747 = vld [vmem:[%s3 + $0x64] sm:$0xf]
        %v748 = vld [vmem:[%s3 + $0x68] sm:$0xf]
        %v749 = vld [vmem:[%s3 + $0x6c] sm:$0xf]
        %v750 = vld [vmem:[%s3 + $0x70] sm:$0xf]
        %v751 = vld [vmem:[%s3 + $0x74] sm:$0xf]
        %v752 = vld [vmem:[%s3 + $0x78] sm:$0xf]
        %v753 = vld [vmem:[%s3 + $0x7c] sm:$0xf]
        %v786 = vunpack.c.l.b16 %v722
        %v787 = vunpack.c.l.b16 %v723
        %v788 = vunpack.c.l.b16 %v724
        %v789 = vunpack.c.l.b16 %v725
        %v790 = vunpack.c.l.b16 %v726
        %v791 = vunpack.c.l.b16 %v727
        %v792 = vunpack.c.l.b16 %v728
        %v793 = vunpack.c.l.b16 %v729
        %v794 = vunpack.c.l.b16 %v730
        %v795 = vunpack.c.l.b16 %v731
        %v796 = vunpack.c.l.b16 %v732
        %v797 = vunpack.c.l.b16 %v733
        %v798 = vunpack.c.l.b16 %v734
        %v799 = vunpack.c.l.b16 %v735
        %v800 = vunpack.c.l.b16 %v736
        %v801 = vunpack.c.l.b16 %v737
        %v802 = vunpack.c.l.b16 %v738
        %v803 = vunpack.c.l.b16 %v739
        %v804 = vunpack.c.l.b16 %v740
        %v805 = vunpack.c.l.b16 %v741
        %v806 = vunpack.c.l.b16 %v742
        %v807 = vunpack.c.l.b16 %v743
        %v808 = vunpack.c.l.b16 %v744
        %v809 = vunpack.c.l.b16 %v745
        %v810 = vunpack.c.l.b16 %v746
        %v811 = vunpack.c.l.b16 %v747
        %v812 = vunpack.c.l.b16 %v748
        %v813 = vunpack.c.l.b16 %v749
        %v814 = vunpack.c.l.b16 %v750
        %v815 = vunpack.c.l.b16 %v751
        %v816 = vunpack.c.l.b16 %v752
        %v817 = vunpack.c.l.b16 %v753
        %v818 = vpack.c.b16 %v787, %v786
        %v819 = vpack.c.b16 %v789, %v788
        %v820 = vpack.c.b16 %v791, %v790
        %v821 = vpack.c.b16 %v793, %v792
        %v822 = vpack.c.b16 %v795, %v794
        %v823 = vpack.c.b16 %v797, %v796
        %v824 = vpack.c.b16 %v799, %v798
        %v825 = vpack.c.b16 %v801, %v800
        %v826 = vpack.c.b16 %v803, %v802
        %v827 = vpack.c.b16 %v805, %v804
        %v828 = vpack.c.b16 %v807, %v806
        %v829 = vpack.c.b16 %v809, %v808
        %v830 = vpack.c.b16 %v811, %v810
        %v831 = vpack.c.b16 %v813, %v812
        %v832 = vpack.c.b16 %v815, %v814
        %v833 = vpack.c.b16 %v817, %v816
        %vm834 = vcmask 654336
        %v836 = vsel %vm834, %v818, 0
        %v839 = vsel %vm834, %v819, 0
        %v842 = vsel %vm834, %v820, 0
        %v845 = vsel %vm834, %v821, 0
        %v848 = vsel %vm834, %v822, 0
        %v851 = vsel %vm834, %v823, 0
        %v854 = vsel %vm834, %v824, 0
        %v857 = vsel %vm834, %v825, 0
        %v860 = vsel %vm834, %v826, 0
        %v863 = vsel %vm834, %v827, 0
        %v866 = vsel %vm834, %v828, 0
        %v869 = vsel %vm834, %v829, 0
        %v872 = vsel %vm834, %v830, 0
        %v875 = vsel %vm834, %v831, 0
        %v878 = vsel %vm834, %v832, 0
        %v881 = vsel %vm834, %v833, 0
        %883 = vmatprep.subr.bf16.mxu0 0
        %884 = vmatpush1.bf16.msra.mxu0 %v717
        %885 = vmatprep.subr.bf16.mxu0 0
        %886 = vmatpush1.bf16.msra.mxu0 %v718
        %887 = vmatprep.subr.bf16.mxu0 0
        %888 = vmatpush1.bf16.msra.mxu0 %v719
        %889 = vmatprep.subr.bf16.mxu0 0
        %890 = vmatpush1.bf16.msra.mxu0 %v720
        %891 = vmatprep.subr.bf16.mxu0 0
        %892 = vmatpush1.bf16.msra.mxu0 %v721
        %893 = vmatprep.subr.bf16.mxu0 0
        %894 = vmatpush1.bf16.msra.mxu0 0
        %895 = vmatprep.subr.bf16.mxu0 0
        %896 = vmatpush1.bf16.msra.mxu0 0
        %897 = vmatprep.subr.bf16.mxu0 0
        %898 = vmatpush1.bf16.msra.mxu0 0
        %899 = vmatprep.subr.bf16.mxu0 0
        %900 = vmatpush1.bf16.msra.mxu0 0
        %901 = vmatprep.subr.bf16.mxu0 0
        %902 = vmatpush1.bf16.msra.mxu0 0
        %903 = vmatprep.subr.bf16.mxu0 0
        %904 = vmatpush1.bf16.msra.mxu0 0
        %905 = vmatprep.subr.bf16.mxu0 0
        %906 = vmatpush1.bf16.msra.mxu0 0
        %907 = vmatprep.subr.bf16.mxu0 0
        %908 = vmatpush1.bf16.msra.mxu0 0
        %909 = vmatprep.subr.bf16.mxu0 0
        %910 = vmatpush1.bf16.msra.mxu0 0
        %911 = vmatprep.subr.bf16.mxu0 0
        %912 = vmatpush1.bf16.msra.mxu0 0
        %913 = vmatprep.subr.bf16.mxu0 0
        %914 = vmatpush1.bf16.msra.mxu0 0
        %915 = vmatprep.mubr.bf16.mxu0 0
        %916 = vmatmul.mubr.bf16.gmra.mrb[0].mxu0 %v836
        %v917 = vpop.f32.mrb[0].mxu0
        %v918 = vadd.f32 0.0, %v917
        %v919 = vpop.f32.mrb[0].mxu0
        %v920 = vpop.f32.mrb[0].mxu0
        %v921 = vadd.f32 0.0, %v920
        %v922 = vpop.f32.mrb[0].mxu0
        %923 = vmatprep.mubr.bf16.mxu0 0
        %924 = vmatmul.mubr.bf16.gmra.mrb[0].mxu0 %v839
        %v925 = vpop.f32.mrb[0].mxu0
        %v926 = vadd.f32 0.0, %v925
        %v927 = vpop.f32.mrb[0].mxu0
        %v928 = vpop.f32.mrb[0].mxu0
        %v929 = vadd.f32 0.0, %v928
        %v930 = vpop.f32.mrb[0].mxu0
        %931 = vmatprep.mubr.bf16.mxu0 0
        %932 = vmatmul.mubr.bf16.gmra.mrb[0].mxu0 %v842
        %v933 = vpop.f32.mrb[0].mxu0
        %v934 = vadd.f32 0.0, %v933
        %v935 = vpop.f32.mrb[0].mxu0
        %v936 = vpop.f32.mrb[0].mxu0
        %v937 = vadd.f32 0.0, %v936
        %v938 = vpop.f32.mrb[0].mxu0
        %939 = vmatprep.mubr.bf16.mxu0 0
        %940 = vmatmul.mubr.bf16.gmra.mrb[0].mxu0 %v845
        %v941 = vpop.f32.mrb[0].mxu0
        %v942 = vadd.f32 0.0, %v941
        %v943 = vpop.f32.mrb[0].mxu0
        %v944 = vpop.f32.mrb[0].mxu0
        %v945 = vadd.f32 0.0, %v944
        %v946 = vpop.f32.mrb[0].mxu0
        %947 = vmatprep.mubr.bf16.mxu0 0
        %948 = vmatmul.mubr.bf16.gmra.mrb[0].mxu0 %v848
        %v949 = vpop.f32.mrb[0].mxu0
        %v950 = vadd.f32 0.0, %v949
        %v951 = vpop.f32.mrb[0].mxu0
        %v952 = vpop.f32.mrb[0].mxu0
        %v953 = vadd.f32 0.0, %v952
        %v954 = vpop.f32.mrb[0].mxu0
        %955 = vmatprep.mubr.bf16.mxu0 0
        %956 = vmatmul.mubr.bf16.gmra.mrb[0].mxu0 %v851
        %v957 = vpop.f32.mrb[0].mxu0
        %v958 = vadd.f32 0.0, %v957
        %v959 = vpop.f32.mrb[0].mxu0
        %v960 = vpop.f32.mrb[0].mxu0
        %v961 = vadd.f32 0.0, %v960
        %v962 = vpop.f32.mrb[0].mxu0
        %963 = vmatprep.mubr.bf16.mxu0 0
        %964 = vmatmul.mubr.bf16.gmra.mrb[0].mxu0 %v854
        %v965 = vpop.f32.mrb[0].mxu0
        %v966 = vadd.f32 0.0, %v965
        %v967 = vpop.f32.mrb[0].mxu0
        %v968 = vpop.f32.mrb[0].mxu0
        %v969 = vadd.f32 0.0, %v968
        %v970 = vpop.f32.mrb[0].mxu0
        %971 = vmatprep.mubr.bf16.mxu0 0
        %972 = vmatmul.mubr.bf16.gmra.mrb[0].mxu0 %v857
        %v973 = vpop.f32.mrb[0].mxu0
        %v974 = vadd.f32 0.0, %v973
        %v975 = vpop.f32.mrb[0].mxu0
        %v976 = vpop.f32.mrb[0].mxu0
        %v977 = vadd.f32 0.0, %v976
        %v978 = vpop.f32.mrb[0].mxu0
        %979 = vmatprep.mubr.bf16.mxu0 0
        %980 = vmatmul.mubr.bf16.gmra.mrb[0].mxu0 %v860
        %v981 = vpop.f32.mrb[0].mxu0
        %v982 = vadd.f32 0.0, %v981
        %v983 = vpop.f32.mrb[0].mxu0
        %v984 = vpop.f32.mrb[0].mxu0
        %v985 = vadd.f32 0.0, %v984
        %v986 = vpop.f32.mrb[0].mxu0
        %987 = vmatprep.mubr.bf16.mxu0 0
        %988 = vmatmul.mubr.bf16.gmra.mrb[0].mxu0 %v863
        %v989 = vpop.f32.mrb[0].mxu0
        %v990 = vadd.f32 0.0, %v989
        %v991 = vpop.f32.mrb[0].mxu0
        %v992 = vpop.f32.mrb[0].mxu0
        %v993 = vadd.f32 0.0, %v992
        %v994 = vpop.f32.mrb[0].mxu0
        %995 = vmatprep.mubr.bf16.mxu0 0
        %996 = vmatmul.mubr.bf16.gmra.mrb[0].mxu0 %v866
        %v997 = vpop.f32.mrb[0].mxu0
        %v998 = vadd.f32 0.0, %v997
        %v999 = vpop.f32.mrb[0].mxu0
        %v1000 = vpop.f32.mrb[0].mxu0
        %v1001 = vadd.f32 0.0, %v1000
        %v1002 = vpop.f32.mrb[0].mxu0
        %1003 = vmatprep.mubr.bf16.mxu0 0
        %1004 = vmatmul.mubr.bf16.gmra.mrb[0].mxu0 %v869
        %v1005 = vpop.f32.mrb[0].mxu0
        %v1006 = vadd.f32 0.0, %v1005
        %v1007 = vpop.f32.mrb[0].mxu0
        %v1008 = vpop.f32.mrb[0].mxu0
        %v1009 = vadd.f32 0.0, %v1008
        %v1010 = vpop.f32.mrb[0].mxu0
        %1011 = vmatprep.mubr.bf16.mxu0 0
        %1012 = vmatmul.mubr.bf16.gmra.mrb[0].mxu0 %v872
        %v1013 = vpop.f32.mrb[0].mxu0
        %v1014 = vadd.f32 0.0, %v1013
        %v1015 = vpop.f32.mrb[0].mxu0
        %v1016 = vpop.f32.mrb[0].mxu0
        %v1017 = vadd.f32 0.0, %v1016
        %v1018 = vpop.f32.mrb[0].mxu0
        %1019 = vmatprep.mubr.bf16.mxu0 0
        %1020 = vmatmul.mubr.bf16.gmra.mrb[0].mxu0 %v875
        %v1021 = vpop.f32.mrb[0].mxu0
        %v1022 = vadd.f32 0.0, %v1021
        %v1023 = vpop.f32.mrb[0].mxu0
        %v1024 = vpop.f32.mrb[0].mxu0
        %v1025 = vadd.f32 0.0, %v1024
        %v1026 = vpop.f32.mrb[0].mxu0
        %1027 = vmatprep.mubr.bf16.mxu0 0
        %1028 = vmatmul.mubr.bf16.gmra.mrb[0].mxu0 %v878
        %v1029 = vpop.f32.mrb[0].mxu0
        %v1030 = vadd.f32 0.0, %v1029
        %v1031 = vpop.f32.mrb[0].mxu0
        %v1032 = vpop.f32.mrb[0].mxu0
        %v1033 = vadd.f32 0.0, %v1032
        %v1034 = vpop.f32.mrb[0].mxu0
        %1035 = vmatprep.mubr.bf16.mxu0 0
        %1036 = vmatmul.mubr.bf16.gmra.mrb[0].mxu0 %v881
        %v1037 = vpop.f32.mrb[0].mxu0
        %v1038 = vadd.f32 0.0, %v1037
        %v1039 = vpop.f32.mrb[0].mxu0
        %v1040 = vpop.f32.mrb[0].mxu0
        %v1041 = vadd.f32 0.0, %v1040
        %v1042 = vpop.f32.mrb[0].mxu0
        %1043 = vdwg.mxu0
        %1044 = vrot.lane.b32.xlu0 %v926, 16
        %v1045 = vpop.permute.xlu0 %1044
        %1046 = vrot.lane.b32.xlu0 %v929, 16
        %v1047 = vpop.permute.xlu0 %1046
        %v1048 = vadd.f32 %v918, %v1045
        %v1049 = vadd.f32 %v921, %v1047
        %1050 = vrot.lane.b32.xlu0 %v934, 32
        %v1051 = vpop.permute.xlu0 %1050
        %1052 = vrot.lane.b32.xlu0 %v937, 32
        %v1053 = vpop.permute.xlu0 %1052
        %v1054 = vadd.f32 %v1048, %v1051
        %v1055 = vadd.f32 %v1049, %v1053
        %1056 = vrot.lane.b32.xlu0 %v942, 48
        %v1057 = vpop.permute.xlu0 %1056
        %1058 = vrot.lane.b32.xlu0 %v945, 48
        %v1059 = vpop.permute.xlu0 %1058
        %v1060 = vadd.f32 %v1054, %v1057
        %v1061 = vadd.f32 %v1055, %v1059
        %1062 = vrot.lane.b32.xlu0 %v950, 64
        %v1063 = vpop.permute.xlu0 %1062
        %1064 = vrot.lane.b32.xlu0 %v953, 64
        %v1065 = vpop.permute.xlu0 %1064
        %v1066 = vadd.f32 %v1060, %v1063
        %v1067 = vadd.f32 %v1061, %v1065
        %1068 = vrot.lane.b32.xlu0 %v958, 80
        %v1069 = vpop.permute.xlu0 %1068
        %1070 = vrot.lane.b32.xlu0 %v961, 80
        %v1071 = vpop.permute.xlu0 %1070
        %v1072 = vadd.f32 %v1066, %v1069
        %v1073 = vadd.f32 %v1067, %v1071
        %1074 = vrot.lane.b32.xlu0 %v966, 96
        %v1075 = vpop.permute.xlu0 %1074
        %1076 = vrot.lane.b32.xlu0 %v969, 96
        %v1077 = vpop.permute.xlu0 %1076
        %v1078 = vadd.f32 %v1072, %v1075
        %v1079 = vadd.f32 %v1073, %v1077
        %1080 = vrot.lane.b32.xlu0 %v974, 112
        %v1081 = vpop.permute.xlu0 %1080
        %1082 = vrot.lane.b32.xlu0 %v977, 112
        %v1083 = vpop.permute.xlu0 %1082
        %v1084 = vadd.f32 %v1078, %v1081
        %v1085 = vadd.f32 %v1079, %v1083
        %1086 = vrot.lane.b32.xlu0 %v990, 16
        %v1087 = vpop.permute.xlu0 %1086
        %1088 = vrot.lane.b32.xlu0 %v993, 16
        %v1089 = vpop.permute.xlu0 %1088
        %v1090 = vadd.f32 %v982, %v1087
        %v1091 = vadd.f32 %v985, %v1089
        %1092 = vrot.lane.b32.xlu0 %v998, 32
        %v1093 = vpop.permute.xlu0 %1092
        %1094 = vrot.lane.b32.xlu0 %v1001, 32
        %v1095 = vpop.permute.xlu0 %1094
        %v1096 = vadd.f32 %v1090, %v1093
        %v1097 = vadd.f32 %v1091, %v1095
        %1098 = vrot.lane.b32.xlu0 %v1006, 48
        %v1099 = vpop.permute.xlu0 %1098
        %1100 = vrot.lane.b32.xlu0 %v1009, 48
        %v1101 = vpop.permute.xlu0 %1100
        %v1102 = vadd.f32 %v1096, %v1099
        %v1103 = vadd.f32 %v1097, %v1101
        %1104 = vrot.lane.b32.xlu0 %v1014, 64
        %v1105 = vpop.permute.xlu0 %1104
        %1106 = vrot.lane.b32.xlu0 %v1017, 64
        %v1107 = vpop.permute.xlu0 %1106
        %v1108 = vadd.f32 %v1102, %v1105
        %v1109 = vadd.f32 %v1103, %v1107
        %1110 = vrot.lane.b32.xlu0 %v1022, 80
        %v1111 = vpop.permute.xlu0 %1110
        %1112 = vrot.lane.b32.xlu0 %v1025, 80
        %v1113 = vpop.permute.xlu0 %1112
        %v1114 = vadd.f32 %v1108, %v1111
        %v1115 = vadd.f32 %v1109, %v1113
        %1116 = vrot.lane.b32.xlu0 %v1030, 96
        %v1117 = vpop.permute.xlu0 %1116
        %1118 = vrot.lane.b32.xlu0 %v1033, 96
        %v1119 = vpop.permute.xlu0 %1118
        %v1120 = vadd.f32 %v1114, %v1117
        %v1121 = vadd.f32 %v1115, %v1119
        %1122 = vrot.lane.b32.xlu0 %v1038, 112
        %v1123 = vpop.permute.xlu0 %1122
        %1124 = vrot.lane.b32.xlu0 %v1041, 112
        %v1125 = vpop.permute.xlu0 %1124
        %v1126 = vadd.f32 %v1120, %v1123
        %v1127 = vadd.f32 %v1121, %v1125
        %v1128 = vpack.c.bf16 %v1085, %v1084
        %v1129 = vpack.c.bf16 %v1127, %v1126
        %v1130 = vld [vmem:[%s4] sm:$0xf]
        %v1131 = vld [vmem:[%s4 + $0x4] sm:$0xf]
        %v1132 = vld [vmem:[%s4 + $0x8] sm:$0xf]
        %v1133 = vld [vmem:[%s4 + $0xc] sm:$0xf]
        %v1134 = vld [vmem:[%s4 + $0x10] sm:$0xf]
        %v1135 = vld [vmem:[%s4 + $0x14] sm:$0xf]
        %v1136 = vld [vmem:[%s4 + $0x18] sm:$0xf]
        %v1137 = vld [vmem:[%s4 + $0x1c] sm:$0xf]
        %v1138 = vld [vmem:[%s4 + $0x20] sm:$0xf]
        %v1139 = vld [vmem:[%s4 + $0x24] sm:$0xf]
        %v1140 = vld [vmem:[%s4 + $0x28] sm:$0xf]
        %v1141 = vld [vmem:[%s4 + $0x2c] sm:$0xf]
        %v1142 = vld [vmem:[%s4 + $0x30] sm:$0xf]
        %v1143 = vld [vmem:[%s4 + $0x34] sm:$0xf]
        %v1144 = vld [vmem:[%s4 + $0x38] sm:$0xf]
        %v1145 = vld [vmem:[%s4 + $0x3c] sm:$0xf]
        %v1146 = vld [vmem:[%s4 + $0x40] sm:$0xf]
        %v1147 = vld [vmem:[%s4 + $0x44] sm:$0xf]
        %v1148 = vld [vmem:[%s4 + $0x48] sm:$0xf]
        %v1149 = vld [vmem:[%s4 + $0x4c] sm:$0xf]
        %v1150 = vld [vmem:[%s4 + $0x50] sm:$0xf]
        %v1151 = vld [vmem:[%s4 + $0x54] sm:$0xf]
        %v1152 = vld [vmem:[%s4 + $0x58] sm:$0xf]
        %v1153 = vld [vmem:[%s4 + $0x5c] sm:$0xf]
        %v1154 = vld [vmem:[%s4 + $0x60] sm:$0xf]
        %v1155 = vld [vmem:[%s4 + $0x64] sm:$0xf]
        %v1156 = vld [vmem:[%s4 + $0x68] sm:$0xf]
        %v1157 = vld [vmem:[%s4 + $0x6c] sm:$0xf]
        %v1158 = vld [vmem:[%s4 + $0x70] sm:$0xf]
        %v1159 = vld [vmem:[%s4 + $0x74] sm:$0xf]
        %v1160 = vld [vmem:[%s4 + $0x78] sm:$0xf]
        %v1161 = vld [vmem:[%s4 + $0x7c] sm:$0xf]
        %v1162 = vld [vmem:[%s5] sm:$0x1]
        %v1164 = vlaneseq
        %v1165 = vshrl.u32 %v1164, 7
        %v1166 = vsub.s32 0, %v1165
        %v1167 = vrot.slane %v1162, %v1166
        %v1201 = vunpack.c.l.b16 %v1130
        %v1202 = vunpack.c.l.b16 %v1131
        %v1203 = vunpack.c.l.b16 %v1132
        %v1204 = vunpack.c.l.b16 %v1133
        %v1205 = vunpack.c.l.b16 %v1134
        %v1206 = vunpack.c.l.b16 %v1135
        %v1207 = vunpack.c.l.b16 %v1136
        %v1208 = vunpack.c.l.b16 %v1137
        %v1209 = vunpack.c.l.b16 %v1138
        %v1210 = vunpack.c.l.b16 %v1139
        %v1211 = vunpack.c.l.b16 %v1140
        %v1212 = vunpack.c.l.b16 %v1141
        %v1213 = vunpack.c.l.b16 %v1142
        %v1214 = vunpack.c.l.b16 %v1143
        %v1215 = vunpack.c.l.b16 %v1144
        %v1216 = vunpack.c.l.b16 %v1145
        %v1217 = vunpack.c.l.b16 %v1146
        %v1218 = vunpack.c.l.b16 %v1147
        %v1219 = vunpack.c.l.b16 %v1148
        %v1220 = vunpack.c.l.b16 %v1149
        %v1221 = vunpack.c.l.b16 %v1150
        %v1222 = vunpack.c.l.b16 %v1151
        %v1223 = vunpack.c.l.b16 %v1152
        %v1224 = vunpack.c.l.b16 %v1153
        %v1225 = vunpack.c.l.b16 %v1154
        %v1226 = vunpack.c.l.b16 %v1155
        %v1227 = vunpack.c.l.b16 %v1156
        %v1228 = vunpack.c.l.b16 %v1157
        %v1229 = vunpack.c.l.b16 %v1158
        %v1230 = vunpack.c.l.b16 %v1159
        %v1231 = vunpack.c.l.b16 %v1160
        %v1232 = vunpack.c.l.b16 %v1161
        %v1233 = vpack.c.b16 %v1202, %v1201
        %v1234 = vpack.c.b16 %v1204, %v1203
        %v1235 = vpack.c.b16 %v1206, %v1205
        %v1236 = vpack.c.b16 %v1208, %v1207
        %v1237 = vpack.c.b16 %v1210, %v1209
        %v1238 = vpack.c.b16 %v1212, %v1211
        %v1239 = vpack.c.b16 %v1214, %v1213
        %v1240 = vpack.c.b16 %v1216, %v1215
        %v1241 = vpack.c.b16 %v1218, %v1217
        %v1242 = vpack.c.b16 %v1220, %v1219
        %v1243 = vpack.c.b16 %v1222, %v1221
        %v1244 = vpack.c.b16 %v1224, %v1223
        %v1245 = vpack.c.b16 %v1226, %v1225
        %v1246 = vpack.c.b16 %v1228, %v1227
        %v1247 = vpack.c.b16 %v1230, %v1229
        %v1248 = vpack.c.b16 %v1232, %v1231
        %1265 = vmatprep.subr.bf16.mxu0 0
        %1266 = vmatpush1.bf16.msra.mxu0 %v1233
        %1267 = vmatprep.subr.bf16.mxu0 0
        %1268 = vmatpush1.bf16.msra.mxu0 %v1234
        %1269 = vmatprep.subr.bf16.mxu0 0
        %1270 = vmatpush1.bf16.msra.mxu0 %v1235
        %1271 = vmatprep.subr.bf16.mxu0 0
        %1272 = vmatpush1.bf16.msra.mxu0 %v1236
        %1273 = vmatprep.subr.bf16.mxu0 0
        %1274 = vmatpush1.bf16.msra.mxu0 %v1237
        %1275 = vmatprep.subr.bf16.mxu0 0
        %1276 = vmatpush1.bf16.msra.mxu0 %v1238
        %1277 = vmatprep.subr.bf16.mxu0 0
        %1278 = vmatpush1.bf16.msra.mxu0 %v1239
        %1279 = vmatprep.subr.bf16.mxu0 0
        %1280 = vmatpush1.bf16.msra.mxu0 %v1240
        %1281 = vmatprep.subr.bf16.mxu0 0
        %1282 = vmatpush1.bf16.msra.mxu0 %v1241
        %1283 = vmatprep.subr.bf16.mxu0 0
        %1284 = vmatpush1.bf16.msra.mxu0 %v1242
        %1285 = vmatprep.subr.bf16.mxu0 0
        %1286 = vmatpush1.bf16.msra.mxu0 %v1243
        %1287 = vmatprep.subr.bf16.mxu0 0
        %1288 = vmatpush1.bf16.msra.mxu0 %v1244
        %1289 = vmatprep.subr.bf16.mxu0 0
        %1290 = vmatpush1.bf16.msra.mxu0 %v1245
        %1291 = vmatprep.subr.bf16.mxu0 0
        %1292 = vmatpush1.bf16.msra.mxu0 %v1246
        %1293 = vmatprep.subr.bf16.mxu0 0
        %1294 = vmatpush1.bf16.msra.mxu0 %v1247
        %1295 = vmatprep.subr.bf16.mxu0 0
        %1296 = vmatpush1.bf16.msra.mxu0 %v1248
        %1297 = vmatprep.mubr.bf16.mxu0 %v1129
        %1298 = vmatmul.mubr.bf16.gmra.mrb[0].mxu0 %v1128
        %v1299 = vpop.f32.mrb[0].mxu0
        %v1300 = vadd.f32 %v1167, %v1299
        %v1301 = vpop.f32.mrb[0].mxu0
        %v1302 = vpop.f32.mrb[0].mxu0
        %v1303 = vadd.f32 %v1167, %v1302
        %v1304 = vpop.f32.mrb[0].mxu0
        %1305 = vdwg.mxu0
        %v1306 = vmax.f32 %v1300, 0.0
        %v1307 = vmax.f32 %v1303, 0.0
        %v1308 = vpack.c.bf16 %v1307, %v1306
        %v1309 = vld [vmem:[%s6] sm:$0xf]
        %v1310 = vld [vmem:[%s6 + $0x4] sm:$0xf]
        %v1311 = vld [vmem:[%s6 + $0x8] sm:$0xf]
        %v1312 = vld [vmem:[%s6 + $0xc] sm:$0xf]
        %v1313 = vld [vmem:[%s6 + $0x10] sm:$0xf]
        %v1314 = vld [vmem:[%s6 + $0x14] sm:$0xf]
        %v1315 = vld [vmem:[%s6 + $0x18] sm:$0xf]
        %v1316 = vld [vmem:[%s6 + $0x1c] sm:$0xf]
        %v1317 = vld [vmem:[%s6 + $0x20] sm:$0xf]
        %v1327 = vunpack.c.l.b16 %v1309
        %v1328 = vunpack.c.l.b16 %v1310
        %v1329 = vunpack.c.l.b16 %v1311
        %v1330 = vunpack.c.l.b16 %v1312
        %v1331 = vunpack.c.l.b16 %v1313
        %v1332 = vunpack.c.l.b16 %v1314
        %v1333 = vunpack.c.l.b16 %v1315
        %v1334 = vunpack.c.l.b16 %v1316
        %v1335 = vunpack.c.l.b16 %v1317
        %v1336 = vpack.c.b16 %v1328, %v1327
        %v1337 = vpack.c.b16 %v1330, %v1329
        %v1338 = vpack.c.b16 %v1332, %v1331
        %v1339 = vpack.c.b16 %v1334, %v1333
        %v1340 = vpack.c.b16 %v1335, %v1335
        %vm1341 = vcmask 130048
        %v1343 = vsel %vm1341, %v1336, 0
        %v1346 = vsel %vm1341, %v1337, 0
        %v1349 = vsel %vm1341, %v1338, 0
        %v1352 = vsel %vm1341, %v1339, 0
        %v1355 = vsel %vm1341, %v1340, 0
        %1357 = vmatprep.subr.bf16.mxu0 0
        %1358 = vmatpush1.bf16.msra.mxu0 %v1308
        %1359 = vmatprep.subr.bf16.mxu0 0
        %1360 = vmatpush1.bf16.msra.mxu0 0
        %1361 = vmatprep.subr.bf16.mxu0 0
        %1362 = vmatpush1.bf16.msra.mxu0 0
        %1363 = vmatprep.subr.bf16.mxu0 0
        %1364 = vmatpush1.bf16.msra.mxu0 0
        %1365 = vmatprep.subr.bf16.mxu0 0
        %1366 = vmatpush1.bf16.msra.mxu0 0
        %1367 = vmatprep.subr.bf16.mxu0 0
        %1368 = vmatpush1.bf16.msra.mxu0 0
        %1369 = vmatprep.subr.bf16.mxu0 0
        %1370 = vmatpush1.bf16.msra.mxu0 0
        %1371 = vmatprep.subr.bf16.mxu0 0
        %1372 = vmatpush1.bf16.msra.mxu0 0
        %1373 = vmatprep.subr.bf16.mxu0 0
        %1374 = vmatpush1.bf16.msra.mxu0 0
        %1375 = vmatprep.subr.bf16.mxu0 0
        %1376 = vmatpush1.bf16.msra.mxu0 0
        %1377 = vmatprep.subr.bf16.mxu0 0
        %1378 = vmatpush1.bf16.msra.mxu0 0
        %1379 = vmatprep.subr.bf16.mxu0 0
        %1380 = vmatpush1.bf16.msra.mxu0 0
        %1381 = vmatprep.subr.bf16.mxu0 0
        %1382 = vmatpush1.bf16.msra.mxu0 0
        %1383 = vmatprep.subr.bf16.mxu0 0
        %1384 = vmatpush1.bf16.msra.mxu0 0
        %1385 = vmatprep.subr.bf16.mxu0 0
        %1386 = vmatpush1.bf16.msra.mxu0 0
        %1387 = vmatprep.subr.bf16.mxu0 0
        %1388 = vmatpush1.bf16.msra.mxu0 0
        %1389 = vmatprep.mubr.bf16.mxu0 0
        %1390 = vmatmul.mubr.bf16.gmra.mrb[0].mxu0 %v1343
        %v1391 = vpop.f32.mrb[0].mxu0
        %v1392 = vadd.f32 0.0, %v1391
        %v1393 = vpop.f32.mrb[0].mxu0
        %v1394 = vpop.f32.mrb[0].mxu0
        %v1395 = vadd.f32 0.0, %v1394
        %v1396 = vpop.f32.mrb[0].mxu0
        %1397 = vmatprep.mubr.bf16.mxu0 0
        %1398 = vmatmul.mubr.bf16.gmra.mrb[0].mxu0 %v1346
        %v1399 = vpop.f32.mrb[0].mxu0
        %v1400 = vadd.f32 0.0, %v1399
        %v1401 = vpop.f32.mrb[0].mxu0
        %v1402 = vpop.f32.mrb[0].mxu0
        %v1403 = vadd.f32 0.0, %v1402
        %v1404 = vpop.f32.mrb[0].mxu0
        %1405 = vmatprep.mubr.bf16.mxu0 0
        %1406 = vmatmul.mubr.bf16.gmra.mrb[0].mxu0 %v1349
        %v1407 = vpop.f32.mrb[0].mxu0
        %v1408 = vadd.f32 0.0, %v1407
        %v1409 = vpop.f32.mrb[0].mxu0
        %v1410 = vpop.f32.mrb[0].mxu0
        %v1411 = vadd.f32 0.0, %v1410
        %v1412 = vpop.f32.mrb[0].mxu0
        %1413 = vmatprep.mubr.bf16.mxu0 0
        %1414 = vmatmul.mubr.bf16.gmra.mrb[0].mxu0 %v1352
        %v1415 = vpop.f32.mrb[0].mxu0
        %v1416 = vadd.f32 0.0, %v1415
        %v1417 = vpop.f32.mrb[0].mxu0
        %v1418 = vpop.f32.mrb[0].mxu0
        %v1419 = vadd.f32 0.0, %v1418
        %v1420 = vpop.f32.mrb[0].mxu0
        %1421 = vmatprep.mubr.bf16.mxu0 0
        %1422 = vmatmul.mubr.bf16.gmra.mrb[0].mxu0 %v1355
        %v1423 = vpop.f32.mrb[0].mxu0
        %v1424 = vadd.f32 0.0, %v1423
        %v1425 = vpop.f32.mrb[0].mxu0
        %v1426 = vpop.f32.mrb[0].mxu0
        %v1427 = vpop.f32.mrb[0].mxu0
        %1428 = vdwg.mxu0
        %1429 = vrot.lane.b32.xlu0 %v1395, 32
        %v1430 = vpop.permute.xlu0 %1429
        %v1431 = vadd.f32 %v1392, %v1430
        %1432 = vrot.lane.b32.xlu0 %v1400, 64
        %v1433 = vpop.permute.xlu0 %1432
        %v1434 = vadd.f32 %v1431, %v1433
        %1435 = vrot.lane.b32.xlu0 %v1403, 96
        %v1436 = vpop.permute.xlu0 %1435
        %v1437 = vadd.f32 %v1434, %v1436
        %1438 = vrot.lane.b32.xlu0 %v1411, 32
        %v1439 = vpop.permute.xlu0 %1438
        %v1440 = vadd.f32 %v1408, %v1439
        %1441 = vrot.lane.b32.xlu0 %v1416, 64
        %v1442 = vpop.permute.xlu0 %1441
        %v1443 = vadd.f32 %v1440, %v1442
        %1444 = vrot.lane.b32.xlu0 %v1419, 96
        %v1445 = vpop.permute.xlu0 %1444
        %v1446 = vadd.f32 %v1443, %v1445
        %v1447 = vpack.c.bf16 %v1437, %v1437
        %v1448 = vpack.c.bf16 %v1446, %v1446
        %v1449 = vpack.c.bf16 %v1424, %v1424
        %v1450 = vld [vmem:[%s7] sm:$0xf]
        %v1451 = vld [vmem:[%s7 + $0x4] sm:$0xf]
        %v1452 = vld [vmem:[%s7 + $0x8] sm:$0xf]
        %v1453 = vld [vmem:[%s7 + $0xc] sm:$0xf]
        %v1454 = vld [vmem:[%s7 + $0x10] sm:$0xf]
        %v1455 = vld [vmem:[%s7 + $0x14] sm:$0xf]
        %v1456 = vld [vmem:[%s7 + $0x18] sm:$0xf]
        %v1457 = vld [vmem:[%s7 + $0x1c] sm:$0xf]
        %v1458 = vld [vmem:[%s7 + $0x20] sm:$0xf]
        %v1459 = vld [vmem:[%s7 + $0x24] sm:$0xf]
        %v1460 = vld [vmem:[%s7 + $0x28] sm:$0xf]
        %v1461 = vld [vmem:[%s7 + $0x2c] sm:$0xf]
        %v1462 = vld [vmem:[%s7 + $0x30] sm:$0xf]
        %v1463 = vld [vmem:[%s7 + $0x34] sm:$0xf]
        %v1464 = vld [vmem:[%s7 + $0x38] sm:$0xf]
        %v1465 = vld [vmem:[%s7 + $0x3c] sm:$0xf]
        %v1466 = vld [vmem:[%s7 + $0x40] sm:$0xf]
        %v1467 = vld [vmem:[%s7 + $0x44] sm:$0xf]
        %v1468 = vld [vmem:[%s7 + $0x48] sm:$0xf]
        %v1469 = vld [vmem:[%s7 + $0x4c] sm:$0xf]
        %v1470 = vld [vmem:[%s7 + $0x50] sm:$0xf]
        %v1471 = vld [vmem:[%s7 + $0x54] sm:$0xf]
        %v1472 = vld [vmem:[%s7 + $0x58] sm:$0xf]
        %v1473 = vld [vmem:[%s7 + $0x5c] sm:$0xf]
        %v1474 = vld [vmem:[%s7 + $0x60] sm:$0xf]
        %v1475 = vld [vmem:[%s7 + $0x64] sm:$0xf]
        %v1476 = vld [vmem:[%s7 + $0x68] sm:$0xf]
        %v1477 = vld [vmem:[%s7 + $0x6c] sm:$0xf]
        %v1478 = vld [vmem:[%s7 + $0x70] sm:$0xf]
        %v1479 = vld [vmem:[%s7 + $0x74] sm:$0xf]
        %v1480 = vld [vmem:[%s7 + $0x78] sm:$0xf]
        %v1481 = vld [vmem:[%s7 + $0x7c] sm:$0xf]
        %v1482 = vld [vmem:[%s7 + $0x80] sm:$0xf]
        %v1483 = vld [vmem:[%s7 + $0x84] sm:$0xf]
        %v1484 = vld [vmem:[%s7 + $0x88] sm:$0xf]
        %v1485 = vld [vmem:[%s7 + $0x8c] sm:$0xf]
        %v1486 = vld [vmem:[%s7 + $0x90] sm:$0xf]
        %v1487 = vld [vmem:[%s7 + $0x94] sm:$0xf]
        %v1488 = vld [vmem:[%s7 + $0x98] sm:$0xf]
        %v1489 = vld [vmem:[%s7 + $0x9c] sm:$0xf]
        %v1490 = vld [vmem:[%s7 + $0xa0] sm:$0xf]
        %v1491 = vld [vmem:[%s7 + $0xa4] sm:$0xf]
        %v1492 = vld [vmem:[%s7 + $0xa8] sm:$0xf]
        %v1493 = vld [vmem:[%s7 + $0xac] sm:$0xf]
        %v1494 = vld [vmem:[%s7 + $0xb0] sm:$0xf]
        %v1495 = vld [vmem:[%s7 + $0xb4] sm:$0xf]
        %v1496 = vld [vmem:[%s7 + $0xb8] sm:$0xf]
        %v1497 = vld [vmem:[%s7 + $0xbc] sm:$0xf]
        %v1498 = vld [vmem:[%s8] sm:$0x1]
        %v1500 = vlaneseq
        %v1501 = vshrl.u32 %v1500, 7
        %v1502 = vsub.s32 0, %v1501
        %v1503 = vrot.slane %v1498, %v1502
        %v1553 = vunpack.c.l.b16 %v1450
        %v1554 = vunpack.c.l.b16 %v1451
        %v1555 = vunpack.c.l.b16 %v1452
        %v1556 = vunpack.c.l.b16 %v1453
        %v1557 = vunpack.c.l.b16 %v1454
        %v1558 = vunpack.c.l.b16 %v1455
        %v1559 = vunpack.c.l.b16 %v1456
        %v1560 = vunpack.c.l.b16 %v1457
        %v1561 = vunpack.c.l.b16 %v1458
        %v1562 = vunpack.c.l.b16 %v1459
        %v1563 = vunpack.c.l.b16 %v1460
        %v1564 = vunpack.c.l.b16 %v1461
        %v1565 = vunpack.c.l.b16 %v1462
        %v1566 = vunpack.c.l.b16 %v1463
        %v1567 = vunpack.c.l.b16 %v1464
        %v1568 = vunpack.c.l.b16 %v1465
        %v1569 = vunpack.c.l.b16 %v1466
        %v1570 = vunpack.c.l.b16 %v1467
        %v1571 = vunpack.c.l.b16 %v1468
        %v1572 = vunpack.c.l.b16 %v1469
        %v1573 = vunpack.c.l.b16 %v1470
        %v1574 = vunpack.c.l.b16 %v1471
        %v1575 = vunpack.c.l.b16 %v1472
        %v1576 = vunpack.c.l.b16 %v1473
        %v1577 = vunpack.c.l.b16 %v1474
        %v1578 = vunpack.c.l.b16 %v1475
        %v1579 = vunpack.c.l.b16 %v1476
        %v1580 = vunpack.c.l.b16 %v1477
        %v1581 = vunpack.c.l.b16 %v1478
        %v1582 = vunpack.c.l.b16 %v1479
        %v1583 = vunpack.c.l.b16 %v1480
        %v1584 = vunpack.c.l.b16 %v1481
        %v1585 = vunpack.c.l.b16 %v1482
        %v1586 = vunpack.c.l.b16 %v1483
        %v1587 = vunpack.c.l.b16 %v1484
        %v1588 = vunpack.c.l.b16 %v1485
        %v1589 = vunpack.c.l.b16 %v1486
        %v1590 = vunpack.c.l.b16 %v1487
        %v1591 = vunpack.c.l.b16 %v1488
        %v1592 = vunpack.c.l.b16 %v1489
        %v1593 = vunpack.c.l.b16 %v1490
        %v1594 = vunpack.c.l.b16 %v1491
        %v1595 = vunpack.c.l.b16 %v1492
        %v1596 = vunpack.c.l.b16 %v1493
        %v1597 = vunpack.c.l.b16 %v1494
        %v1598 = vunpack.c.l.b16 %v1495
        %v1599 = vunpack.c.l.b16 %v1496
        %v1600 = vunpack.c.l.b16 %v1497
        %v1601 = vpack.c.b16 %v1554, %v1553
        %v1602 = vpack.c.b16 %v1556, %v1555
        %v1603 = vpack.c.b16 %v1558, %v1557
        %v1604 = vpack.c.b16 %v1560, %v1559
        %v1605 = vpack.c.b16 %v1562, %v1561
        %v1606 = vpack.c.b16 %v1564, %v1563
        %v1607 = vpack.c.b16 %v1566, %v1565
        %v1608 = vpack.c.b16 %v1568, %v1567
        %v1609 = vpack.c.b16 %v1570, %v1569
        %v1610 = vpack.c.b16 %v1572, %v1571
        %v1611 = vpack.c.b16 %v1574, %v1573
        %v1612 = vpack.c.b16 %v1576, %v1575
        %v1613 = vpack.c.b16 %v1578, %v1577
        %v1614 = vpack.c.b16 %v1580, %v1579
        %v1615 = vpack.c.b16 %v1582, %v1581
        %v1616 = vpack.c.b16 %v1584, %v1583
        %v1617 = vpack.c.b16 %v1586, %v1585
        %v1618 = vpack.c.b16 %v1588, %v1587
        %v1619 = vpack.c.b16 %v1590, %v1589
        %v1620 = vpack.c.b16 %v1592, %v1591
        %v1621 = vpack.c.b16 %v1594, %v1593
        %v1622 = vpack.c.b16 %v1596, %v1595
        %v1623 = vpack.c.b16 %v1598, %v1597
        %v1624 = vpack.c.b16 %v1600, %v1599
        %1649 = vmatprep.subr.bf16.mxu0 0
        %1650 = vmatpush1.bf16.msra.mxu0 %v1601
        %1651 = vmatprep.subr.bf16.mxu0 0
        %1652 = vmatpush1.bf16.msra.mxu0 %v1602
        %1653 = vmatprep.subr.bf16.mxu0 0
        %1654 = vmatpush1.bf16.msra.mxu0 %v1603
        %1655 = vmatprep.subr.bf16.mxu0 0
        %1656 = vmatpush1.bf16.msra.mxu0 %v1604
        %1657 = vmatprep.subr.bf16.mxu0 0
        %1658 = vmatpush1.bf16.msra.mxu0 %v1605
        %1659 = vmatprep.subr.bf16.mxu0 0
        %1660 = vmatpush1.bf16.msra.mxu0 %v1606
        %1661 = vmatprep.subr.bf16.mxu0 0
        %1662 = vmatpush1.bf16.msra.mxu0 %v1607
        %1663 = vmatprep.subr.bf16.mxu0 0
        %1664 = vmatpush1.bf16.msra.mxu0 %v1608
        %1665 = vmatprep.subr.bf16.mxu0 0
        %1666 = vmatpush1.bf16.msra.mxu0 %v1609
        %1667 = vmatprep.subr.bf16.mxu0 0
        %1668 = vmatpush1.bf16.msra.mxu0 %v1610
        %1669 = vmatprep.subr.bf16.mxu0 0
        %1670 = vmatpush1.bf16.msra.mxu0 %v1611
        %1671 = vmatprep.subr.bf16.mxu0 0
        %1672 = vmatpush1.bf16.msra.mxu0 %v1612
        %1673 = vmatprep.subr.bf16.mxu0 0
        %1674 = vmatpush1.bf16.msra.mxu0 %v1613
        %1675 = vmatprep.subr.bf16.mxu0 0
        %1676 = vmatpush1.bf16.msra.mxu0 %v1614
        %1677 = vmatprep.subr.bf16.mxu0 0
        %1678 = vmatpush1.bf16.msra.mxu0 %v1615
        %1679 = vmatprep.subr.bf16.mxu0 0
        %1680 = vmatpush1.bf16.msra.mxu0 %v1616
        %1681 = vmatprep.mubr.bf16.mxu0 %v1448
        %1682 = vmatmul.mubr.bf16.gmra.mrb[0].mxu0 %v1447
        %v1683 = vpop.f32.mrb[0].mxu0
        %v1684 = vadd.f32 %v1503, %v1683
        %v1685 = vpop.f32.mrb[0].mxu0
        %v1686 = vpop.f32.mrb[0].mxu0
        %v1687 = vpop.f32.mrb[0].mxu0
        %1688 = vdwg.mxu0
        %1689 = vmatprep.subr.bf16.mxu0 0
        %1690 = vmatpush1.bf16.msra.mxu0 %v1617
        %1691 = vmatprep.subr.bf16.mxu0 0
        %1692 = vmatpush1.bf16.msra.mxu0 %v1618
        %1693 = vmatprep.subr.bf16.mxu0 0
        %1694 = vmatpush1.bf16.msra.mxu0 %v1619
        %1695 = vmatprep.subr.bf16.mxu0 0
        %1696 = vmatpush1.bf16.msra.mxu0 %v1620
        %1697 = vmatprep.subr.bf16.mxu0 0
        %1698 = vmatpush1.bf16.msra.mxu0 %v1621
        %1699 = vmatprep.subr.bf16.mxu0 0
        %1700 = vmatpush1.bf16.msra.mxu0 %v1622
        %1701 = vmatprep.subr.bf16.mxu0 0
        %1702 = vmatpush1.bf16.msra.mxu0 %v1623
        %1703 = vmatprep.subr.bf16.mxu0 0
        %1704 = vmatpush1.bf16.msra.mxu0 %v1624
        %1705 = vmatprep.subr.bf16.mxu0 0
        %1706 = vmatpush1.bf16.msra.mxu0 0
        %1707 = vmatprep.subr.bf16.mxu0 0
        %1708 = vmatpush1.bf16.msra.mxu0 0
        %1709 = vmatprep.subr.bf16.mxu0 0
        %1710 = vmatpush1.bf16.msra.mxu0 0
        %1711 = vmatprep.subr.bf16.mxu0 0
        %1712 = vmatpush1.bf16.msra.mxu0 0
        %1713 = vmatprep.subr.bf16.mxu0 0
        %1714 = vmatpush1.bf16.msra.mxu0 0
        %1715 = vmatprep.subr.bf16.mxu0 0
        %1716 = vmatpush1.bf16.msra.mxu0 0
        %1717 = vmatprep.subr.bf16.mxu0 0
        %1718 = vmatpush1.bf16.msra.mxu0 0
        %1719 = vmatprep.subr.bf16.mxu0 0
        %1720 = vmatpush1.bf16.msra.mxu0 0
        %1721 = vmatprep.mubr.bf16.mxu0 0
        %1722 = vmatmul.mubr.bf16.gmra.mrb[0].mxu0 %v1449
        %v1723 = vpop.f32.mrb[0].mxu0
        %v1724 = vadd.f32 %v1684, %v1723
        %v1725 = vpop.f32.mrb[0].mxu0
        %v1726 = vpop.f32.mrb[0].mxu0
        %v1727 = vpop.f32.mrb[0].mxu0
        %1728 = vdwg.mxu0
        %v1729 = vmax.f32 %v1724, 0.0
        %v1731 = vrot.slane %v1729, 1
        %1733 = vrot.lane.b32.xlu0 %v1731, 32
        %v1734 = vpop.permute.xlu0 %1733
        %v1735 = vadd.f32 %v1729, %v1734
        %v1736 = vpack.c.bf16 %v1735, %v1735
        %v1737 = vld [vmem:[%s9] sm:$0xf]
        %v1738 = vld [vmem:[%s9 + $0x4] sm:$0xf]
        %v1739 = vld [vmem:[%s9 + $0x8] sm:$0xf]
        %v1740 = vld [vmem:[%s9 + $0xc] sm:$0xf]
        %v1741 = vld [vmem:[%s9 + $0x10] sm:$0xf]
        %v1742 = vld [vmem:[%s9 + $0x14] sm:$0xf]
        %v1743 = vld [vmem:[%s9 + $0x18] sm:$0xf]
        %v1744 = vld [vmem:[%s9 + $0x1c] sm:$0xf]
        %v1745 = vld [vmem:[%s9 + $0x20] sm:$0xf]
        %v1746 = vld [vmem:[%s9 + $0x24] sm:$0xf]
        %v1747 = vld [vmem:[%s9 + $0x28] sm:$0xf]
        %v1748 = vld [vmem:[%s9 + $0x2c] sm:$0xf]
        %v1749 = vld [vmem:[%s9 + $0x30] sm:$0xf]
        %v1750 = vld [vmem:[%s9 + $0x34] sm:$0xf]
        %v1751 = vld [vmem:[%s9 + $0x38] sm:$0xf]
        %v1752 = vld [vmem:[%s9 + $0x3c] sm:$0xf]
        %v1753 = vld [vmem:[%s10] sm:$0x1]
        %v1770 = vunpack.c.l.b16 %v1737
        %v1771 = vunpack.c.l.b16 %v1738
        %v1772 = vunpack.c.l.b16 %v1739
        %v1773 = vunpack.c.l.b16 %v1740
        %v1774 = vunpack.c.l.b16 %v1741
        %v1775 = vunpack.c.l.b16 %v1742
        %v1776 = vunpack.c.l.b16 %v1743
        %v1777 = vunpack.c.l.b16 %v1744
        %v1778 = vunpack.c.l.b16 %v1745
        %v1779 = vunpack.c.l.b16 %v1746
        %v1780 = vunpack.c.l.b16 %v1747
        %v1781 = vunpack.c.l.b16 %v1748
        %v1782 = vunpack.c.l.b16 %v1749
        %v1783 = vunpack.c.l.b16 %v1750
        %v1784 = vunpack.c.l.b16 %v1751
        %v1785 = vunpack.c.l.b16 %v1752
        %v1786 = vpack.c.b16 %v1771, %v1770
        %v1787 = vpack.c.b16 %v1773, %v1772
        %v1788 = vpack.c.b16 %v1775, %v1774
        %v1789 = vpack.c.b16 %v1777, %v1776
        %v1790 = vpack.c.b16 %v1779, %v1778
        %v1791 = vpack.c.b16 %v1781, %v1780
        %v1792 = vpack.c.b16 %v1783, %v1782
        %v1793 = vpack.c.b16 %v1785, %v1784
        %1802 = vmatprep.subr.bf16.mxu0 0
        %1803 = vmatpush1.bf16.msra.mxu0 %v1786
        %1804 = vmatprep.subr.bf16.mxu0 0
        %1805 = vmatpush1.bf16.msra.mxu0 %v1787
        %1806 = vmatprep.subr.bf16.mxu0 0
        %1807 = vmatpush1.bf16.msra.mxu0 %v1788
        %1808 = vmatprep.subr.bf16.mxu0 0
        %1809 = vmatpush1.bf16.msra.mxu0 %v1789
        %1810 = vmatprep.subr.bf16.mxu0 0
        %1811 = vmatpush1.bf16.msra.mxu0 %v1790
        %1812 = vmatprep.subr.bf16.mxu0 0
        %1813 = vmatpush1.bf16.msra.mxu0 %v1791
        %1814 = vmatprep.subr.bf16.mxu0 0
        %1815 = vmatpush1.bf16.msra.mxu0 %v1792
        %1816 = vmatprep.subr.bf16.mxu0 0
        %1817 = vmatpush1.bf16.msra.mxu0 %v1793
        %1818 = vmatprep.subr.bf16.mxu0 0
        %1819 = vmatpush1.bf16.msra.mxu0 0
        %1820 = vmatprep.subr.bf16.mxu0 0
        %1821 = vmatpush1.bf16.msra.mxu0 0
        %1822 = vmatprep.subr.bf16.mxu0 0
        %1823 = vmatpush1.bf16.msra.mxu0 0
        %1824 = vmatprep.subr.bf16.mxu0 0
        %1825 = vmatpush1.bf16.msra.mxu0 0
        %1826 = vmatprep.subr.bf16.mxu0 0
        %1827 = vmatpush1.bf16.msra.mxu0 0
        %1828 = vmatprep.subr.bf16.mxu0 0
        %1829 = vmatpush1.bf16.msra.mxu0 0
        %1830 = vmatprep.subr.bf16.mxu0 0
        %1831 = vmatpush1.bf16.msra.mxu0 0
        %1832 = vmatprep.subr.bf16.mxu0 0
        %1833 = vmatpush1.bf16.msra.mxu0 0
        %1834 = vmatprep.mubr.bf16.mxu0 0
        %1835 = vmatmul.mubr.bf16.gmra.mrb[0].mxu0 %v1736
        %v1836 = vpop.f32.mrb[0].mxu0
        %v1837 = vadd.f32 %v1753, %v1836
        %v1838 = vpop.f32.mrb[0].mxu0
        %v1839 = vpop.f32.mrb[0].mxu0
        %v1840 = vpop.f32.mrb[0].mxu0
        %1841 = vdwg.mxu0
        %v1842 = vmax.f32 %v1837, 0.0
        %v1843 = vpack.c.bf16 %v1842, %v1842
        %v1844 = vld [vmem:[%s11] sm:$0xf]
        %v1845 = vld [vmem:[%s11 + $0x4] sm:$0xf]
        %v1846 = vld [vmem:[%s11 + $0x8] sm:$0xf]
        %v1847 = vld [vmem:[%s11 + $0xc] sm:$0xf]
        %v1848 = vld [vmem:[%s11 + $0x10] sm:$0xf]
        %v1849 = vld [vmem:[%s11 + $0x14] sm:$0xf]
        %v1850 = vld [vmem:[%s11 + $0x18] sm:$0xf]
        %v1851 = vld [vmem:[%s11 + $0x1c] sm:$0xf]
        %v1852 = vld [vmem:[%s11 + $0x20] sm:$0xf]
        %v1853 = vld [vmem:[%s11 + $0x24] sm:$0xf]
        %v1854 = vld [vmem:[%s11 + $0x28] sm:$0xf]
        %v1855 = vld [vmem:[%s11 + $0x2c] sm:$0xf]
        %v1856 = vld [vmem:[%s11 + $0x30] sm:$0xf]
        %v1857 = vld [vmem:[%s11 + $0x34] sm:$0xf]
        %v1858 = vld [vmem:[%s11 + $0x38] sm:$0xf]
        %v1859 = vld [vmem:[%s11 + $0x3c] sm:$0xf]
        %v1860 = vld [vmem:[%s12] sm:$0x1]
        %v1877 = vunpack.c.l.b16 %v1844
        %v1878 = vunpack.c.l.b16 %v1845
        %v1879 = vunpack.c.l.b16 %v1846
        %v1880 = vunpack.c.l.b16 %v1847
        %v1881 = vunpack.c.l.b16 %v1848
        %v1882 = vunpack.c.l.b16 %v1849
        %v1883 = vunpack.c.l.b16 %v1850
        %v1884 = vunpack.c.l.b16 %v1851
        %v1885 = vunpack.c.l.b16 %v1852
        %v1886 = vunpack.c.l.b16 %v1853
        %v1887 = vunpack.c.l.b16 %v1854
        %v1888 = vunpack.c.l.b16 %v1855
        %v1889 = vunpack.c.l.b16 %v1856
        %v1890 = vunpack.c.l.b16 %v1857
        %v1891 = vunpack.c.l.b16 %v1858
        %v1892 = vunpack.c.l.b16 %v1859
        %v1893 = vpack.c.b16 %v1878, %v1877
        %v1894 = vpack.c.b16 %v1880, %v1879
        %v1895 = vpack.c.b16 %v1882, %v1881
        %v1896 = vpack.c.b16 %v1884, %v1883
        %v1897 = vpack.c.b16 %v1886, %v1885
        %v1898 = vpack.c.b16 %v1888, %v1887
        %v1899 = vpack.c.b16 %v1890, %v1889
        %v1900 = vpack.c.b16 %v1892, %v1891
        %1909 = vmatprep.subr.bf16.mxu0 0
        %1910 = vmatpush1.bf16.msra.mxu0 %v1893
        %1911 = vmatprep.subr.bf16.mxu0 0
        %1912 = vmatpush1.bf16.msra.mxu0 %v1894
        %1913 = vmatprep.subr.bf16.mxu0 0
        %1914 = vmatpush1.bf16.msra.mxu0 %v1895
        %1915 = vmatprep.subr.bf16.mxu0 0
        %1916 = vmatpush1.bf16.msra.mxu0 %v1896
        %1917 = vmatprep.subr.bf16.mxu0 0
        %1918 = vmatpush1.bf16.msra.mxu0 %v1897
        %1919 = vmatprep.subr.bf16.mxu0 0
        %1920 = vmatpush1.bf16.msra.mxu0 %v1898
        %1921 = vmatprep.subr.bf16.mxu0 0
        %1922 = vmatpush1.bf16.msra.mxu0 %v1899
        %1923 = vmatprep.subr.bf16.mxu0 0
        %1924 = vmatpush1.bf16.msra.mxu0 %v1900
        %1925 = vmatprep.subr.bf16.mxu0 0
        %1926 = vmatpush1.bf16.msra.mxu0 0
        %1927 = vmatprep.subr.bf16.mxu0 0
        %1928 = vmatpush1.bf16.msra.mxu0 0
        %1929 = vmatprep.subr.bf16.mxu0 0
        %1930 = vmatpush1.bf16.msra.mxu0 0
        %1931 = vmatprep.subr.bf16.mxu0 0
        %1932 = vmatpush1.bf16.msra.mxu0 0
        %1933 = vmatprep.subr.bf16.mxu0 0
        %1934 = vmatpush1.bf16.msra.mxu0 0
        %1935 = vmatprep.subr.bf16.mxu0 0
        %1936 = vmatpush1.bf16.msra.mxu0 0
        %1937 = vmatprep.subr.bf16.mxu0 0
        %1938 = vmatpush1.bf16.msra.mxu0 0
        %1939 = vmatprep.subr.bf16.mxu0 0
        %1940 = vmatpush1.bf16.msra.mxu0 0
        %1941 = vmatprep.mubr.bf16.mxu0 0
        %1942 = vmatmul.mubr.bf16.gmra.mrb[0].mxu0 %v1843
        %v1943 = vpop.f32.mrb[0].mxu0
        %v1944 = vadd.f32 %v1860, %v1943
        %v1945 = vpop.f32.mrb[0].mxu0
        %v1946 = vpop.f32.mrb[0].mxu0
        %v1947 = vpop.f32.mrb[0].mxu0
        %1948 = vdwg.mxu0
        %1949 = vst [vmem:[%s432] sm:$0x1] %v1944
        %s1950 = sand.u32 %s313, 1
        %s1951 = scalar_lea.sflag [#allocation3], %s1950
        %s1952 = sand.u32 %s313, 1
        %s1953 = scalar_lea.vmem [#allocation2], %s1952
        // Predicated region
        $region73: #{pixel_network_forward.1} parent=71 // pred_check
          %p1954 = pneg %p323
        $region74: #{pixel_network_forward.1} parent=71 // pred_check_branch
          %1956 = sbr.rel (%p1954) target = $region76
        $region75: #{pixel_network_forward.1} parent=71 // pred_region
          %s1958 = ssub.s32 16, 16
          %1959 = vsyncadd %s1951, %s1958
          %s1960 = smul.addr %s27, 16
          %s1961 = scalar_lea.hbm %s13, %s1960
          %s1963 = sshll.u32 %s1953, 4
          %s1964 = int_to_ptr.vmem [resolvable:$true] %s1963
          %1966 = dma.vmem_to_hbm [thread:$0]  %s1964, 16, %s1961, %s1951
        $region76: #{pixel_network_forward.1} parent=71 // pred_fallthru
          _
      $region72: #{pixel_network_forward.1} parent=5 // pred_fallthru
        _
      %p1967 = scmp.le.s32.totalorder 2, %s22
      // Predicated region
      $region77: #{pixel_network_forward.1} parent=5 // pred_check
        %p1968 = pneg %p1967
      $region78: #{pixel_network_forward.1} parent=5 // pred_check_branch
        %1970 = sbr.rel (%p1968) target = $region80
      $region79: #{pixel_network_forward.1} parent=5 // pred_region
        %s1971 = ssub.s32 %s22, 2
        // Predicated region
        $region81: #{pixel_network_forward.1} parent=79 // pred_check
          %p1972 = pneg %p329
        $region82: #{pixel_network_forward.1} parent=79 // pred_check_branch
          %1974 = sbr.rel (%p1972) target = $region84
        $region83: #{pixel_network_forward.1} parent=79 // pred_region
          %s1975 = sand.u32 %s314, 1
          %s1976 = scalar_lea.sflag [#allocation3], %s1975
          %s1977 = sand.u32 %s314, 1
          %s1978 = scalar_lea.vmem [#allocation2], %s1977
          %1979 = dma.done %s1976, 16
        $region84: #{pixel_network_forward.1} parent=79 // pred_fallthru
          _
      $region80: #{pixel_network_forward.1} parent=5 // pred_fallthru
        _
    $region6: #{pixel_network_forward.1} parent=1 // loop_footer
      %s26 = sadd.s32 1, %s22
    $region7: #{pixel_network_forward.1} parent=1 // loop_footer_branch
      %21 = sbr.rel target = $region3
    $region8: #{pixel_network_forward.1} parent=1 // loop_exit
      _
    %1980 = vsyncpa [#allocation3], 1
    %s1981 = scalar_lea.sflag [#allocation3], 1
    %1982 = vsyncpa %s1981, 1

</llo_original>
